<compile_context>
chip_gen: v5e
topology: v5e:2x2
jax: 0.10.0
libtpu: 0.0.40
codegen_flags: <defaults>
</compile_context>

<pallas_src>
import functools
import math

import jax
import jax.numpy as jnp
from jax import lax
from jax.experimental import pallas as pl
from jax.experimental.pallas import tpu as pltpu

GLOVE_DIM = 100
HIDDEN = 64
LANE = 128


def _round_up(x, m):
    return (x + m - 1) // m * m


def _gru_fused_kernel(x_ref, wih_ref, bcomb_ref, whh_ref, bhhn_ref,
                      wlin_ref, blin_ref, out_ref, h_ref, gi_ref,
                      *, bp, hp, t_blk, proj_chunk, seq_len):
    """Fused GRU block: chunked input projection (MXU) + serial recurrence.

    x_ref    : (t_blk*BP, DP)    time-major flattened input block (row = t*BP+b)
    wih_ref  : (DP, 3*HP)        W_ih^T, gate-padded, resident (bf16 or f32)
    bcomb_ref: (1, 3*HP)         b_ih (+ b_hh folded for the r/z gates)
    whh_ref  : (HP, 3*HP)        W_hh^T, gate-padded, resident
    bhhn_ref : (1, HP)           b_hh for the n gate only
    wlin_ref : (HP, LANE)        final linear weight^T, lane-dense padded
    blin_ref : (1, LANE)
    out_ref  : (BP, LANE)        sigmoid(logits) in lane 0, rest padding
    h_ref    : VMEM (BP, HP)     hidden state carried across grid steps
    gi_ref   : VMEM (t_blk*BP, 3*HP)  per-block input projections (VMEM only)
    """
    blk = pl.program_id(0)

    @pl.when(blk == 0)
    def _():
        h_ref[...] = jnp.zeros_like(h_ref)

    # ---- Fused time-parallel input projection for this block ----
    # Chunked so each MXU call has M = proj_chunk*BP rows while the f32
    # intermediate stays well inside the vreg file (no spill); gi never
    # leaves VMEM.
    wih = wih_ref[...]
    bcomb = bcomb_ref[...]
    rows = proj_chunk * bp

    def proj_body(c, carry):
        base = pl.multiple_of(c * rows, rows)
        gc = jnp.dot(x_ref[pl.ds(base, rows), :], wih,
                     preferred_element_type=jnp.float32) + bcomb
        gi_ref[pl.ds(base, rows), :] = gc
        return carry

    lax.fori_loop(0, t_blk // proj_chunk, proj_body, 0, unroll=True)

    # ---- Serial recurrence over the t_blk timesteps of this block ----
    whh = whh_ref[...]                                    # resident
    bhhn = jnp.broadcast_to(bhhn_ref[...], (bp, hp))      # hoisted broadcast
    h0 = h_ref[...]
    has_tail = (seq_len % t_blk) != 0                     # Python-static

    def step(i, h):
        row = pl.multiple_of(i * bp, bp)
        gi_t = gi_ref[pl.ds(row, bp), :]                  # (BP, 3HP)
        gh = jnp.dot(h, whh, preferred_element_type=jnp.float32)
        # Lane-aligned gate slices: each gate owns a whole 128-lane slot.
        r = jax.nn.sigmoid(gi_t[:, 0:hp] + gh[:, 0:hp])
        z = jax.nn.sigmoid(gi_t[:, hp:2 * hp] + gh[:, hp:2 * hp])
        n = jnp.tanh(gi_t[:, 2 * hp:3 * hp] + r * (gh[:, 2 * hp:3 * hp] + bhhn))
        h_new = (1.0 - z) * n + z * h
        if has_tail:
            # Padded (t >= seq_len) steps leave the hidden state unchanged.
            # Arithmetic blend; padded x rows are explicit zeros -> finite.
            keep = ((blk * t_blk + i) < seq_len).astype(jnp.float32)
            h_new = keep * h_new + (1.0 - keep) * h
        return h_new

    h_final = lax.fori_loop(0, t_blk, step, h0, unroll=8)
    h_ref[...] = h_final

    @pl.when(blk == pl.num_programs(0) - 1)
    def _():
        logits = jnp.dot(h_final, wlin_ref[...],
                         preferred_element_type=jnp.float32) + blin_ref[...]
        out_ref[...] = jax.nn.sigmoid(logits)


def rnn_forward(x_btd, params, *, t_blk=64, use_bf16=True):
    """Forward pass of the PyTorch RNN module (eval). x_btd: (B, T, D) f32."""
    B, T, D = x_btd.shape
    H = params["w_hh"].shape[0]                 # (H, 3H)

    HP = _round_up(H, LANE)                     # per-gate lane-aligned width
    DP = _round_up(D, LANE)
    BP = _round_up(B, 8)
    in_dtype = jnp.bfloat16 if use_bf16 else jnp.float32
    in_bytes = 2 if use_bf16 else 4

    # Time-block size: >= 8, multiple of 8, no larger than the padded sequence,
    # clamped so the streamed x block (double-buffered) + gi VMEM scratch stay
    # inside a conservative budget (v7x has only 64 MiB physical VMEM).
    vmem_block_budget = 24 * 1024 * 1024
    per_step_bytes = BP * (3 * HP * 4 + 2 * DP * in_bytes)
    max_t = max(8, (vmem_block_budget // per_step_bytes) // 8 * 8)
    t_blk = max(8, min(_round_up(t_blk, 8), _round_up(T, 8), max_t))
    TPAD = _round_up(T, t_blk)
    num_blk = TPAD // t_blk
    # ~64 rows per projection matmul; must divide t_blk.
    proj_chunk = math.gcd(t_blk, max(1, 64 // BP))

    w_ih = params["w_ih"]                       # (D, 3H)   torch W_ih^T
    w_hh = params["w_hh"]                       # (H, 3H)   torch W_hh^T
    b_ih = params["b_ih"].reshape(3 * H)
    b_hh = params["b_hh"].reshape(3 * H)

    # Gate-padded weights: gate g lives in lanes [g*HP, g*HP + H), rest zero,
    # so every gate slice in the kernel is a whole 128-lane vreg slot.
    w_ih_p = jnp.zeros((DP, 3 * HP), jnp.float32)
    w_hh_p = jnp.zeros((HP, 3 * HP), jnp.float32)
    b_comb = jnp.zeros((1, 3 * HP), jnp.float32)
    for g in range(3):
        w_ih_p = w_ih_p.at[:D, g * HP:g * HP + H].set(w_ih[:, g * H:(g + 1) * H])
        w_hh_p = w_hh_p.at[:H, g * HP:g * HP + H].set(w_hh[:, g * H:(g + 1) * H])
        gate_bias = b_ih[g * H:(g + 1) * H]
        if g < 2:                               # r, z: fold b_hh into the precompute
            gate_bias = gate_bias + b_hh[g * H:(g + 1) * H]
        b_comb = b_comb.at[0, g * HP:g * HP + H].set(gate_bias)
    b_hhn = jnp.zeros((1, HP), jnp.float32).at[0, :H].set(b_hh[2 * H:3 * H])
    w_lin_p = jnp.zeros((HP, LANE), jnp.float32).at[:H, 0:1].set(params["w_lin"])
    b_lin_p = jnp.zeros((1, LANE), jnp.float32).at[0, 0].set(params["b_lin"][0, 0])
    w_ih_p = w_ih_p.astype(in_dtype)            # bf16 MXU operand (f32 accum)

    # TODO(synk): fold this transpose/pad staging pass into the kernel's
    # BlockSpec to save one HBM round trip over x.
    x_tbd = jnp.transpose(x_btd, (1, 0, 2)).astype(in_dtype)          # (T, B, D)
    x_p = jnp.zeros((TPAD, BP, DP), in_dtype).at[:T, :B, :D].set(x_tbd)
    x_flat = x_p.reshape(TPAD * BP, DP)         # row = t*BP + b (time-major)

    kernel = functools.partial(
        _gru_fused_kernel, bp=BP, hp=HP, t_blk=t_blk,
        proj_chunk=proj_chunk, seq_len=T)

    out_p = pl.pallas_call(
        kernel,
        out_shape=jax.ShapeDtypeStruct((BP, LANE), jnp.float32),
        grid=(num_blk,),
        in_specs=[
            pl.BlockSpec((t_blk * BP, DP), lambda b: (b, 0)),   # x time-block
            pl.BlockSpec((DP, 3 * HP), lambda b: (0, 0)),       # W_ih^T
            pl.BlockSpec((1, 3 * HP), lambda b: (0, 0)),        # folded bias
            pl.BlockSpec((HP, 3 * HP), lambda b: (0, 0)),       # W_hh^T
            pl.BlockSpec((1, HP), lambda b: (0, 0)),            # b_hh (n gate)
            pl.BlockSpec((HP, LANE), lambda b: (0, 0)),         # W_lin^T
            pl.BlockSpec((1, LANE), lambda b: (0, 0)),          # b_lin
        ],
        out_specs=pl.BlockSpec((BP, LANE), lambda b: (0, 0)),
        scratch_shapes=[
            pltpu.VMEM((BP, HP), jnp.float32),                  # h carry
            pltpu.VMEM((t_blk * BP, 3 * HP), jnp.float32),      # gi (VMEM only)
        ],
        compiler_params=pltpu.CompilerParams(
            dimension_semantics=("arbitrary",),                 # sequential carry
            vmem_limit_bytes=64 * 1024 * 1024),
    )(x_flat, w_ih_p, b_comb, w_hh_p, b_hhn, w_lin_p, b_lin_p)

    return out_p[:B, 0:1]


def init_params(key, input_dim=GLOVE_DIM, hidden=HIDDEN):
    """Deterministic init mimicking PyTorch's U(-1/sqrt(H), 1/sqrt(H))."""
    k = 1.0 / jnp.sqrt(jnp.float32(hidden))
    keys = jax.random.split(key, 6)
    u = lambda kk, shape: jax.random.uniform(kk, shape, jnp.float32, -k, k)
    return {
        "w_ih": u(keys[0], (input_dim, 3 * hidden)),   # == torch W_ih.T
        "w_hh": u(keys[1], (hidden, 3 * hidden)),      # == torch W_hh.T
        "b_ih": u(keys[2], (1, 3 * hidden)),
        "b_hh": u(keys[3], (1, 3 * hidden)),
        "w_lin": u(keys[4], (hidden, 1)),              # == torch linear.weight.T
        "b_lin": u(keys[5], (1, 1)),
    }


def rnn_forward_ref(x_btd, params):
    """Pure-JAX f32 reference of the same forward pass (for sanity check)."""
    B, T, D = x_btd.shape
    H = params["w_hh"].shape[0]
    h = jnp.zeros((B, H), jnp.float32)
    for t in range(T):
        x_t = x_btd[:, t, :]
        gi = x_t @ params["w_ih"] + params["b_ih"]
        gh = h @ params["w_hh"] + params["b_hh"]
        r = jax.nn.sigmoid(gi[:, :H] + gh[:, :H])
        z = jax.nn.sigmoid(gi[:, H:2 * H] + gh[:, H:2 * H])
        n = jnp.tanh(gi[:, 2 * H:] + r * gh[:, 2 * H:])
        h = (1.0 - z) * n + z * h
    return jax.nn.sigmoid(h @ params["w_lin"] + params["b_lin"])


if __name__ == "__main__":
    key = jax.random.PRNGKey(0)
    k_x1, k_x2, k_p = jax.random.split(key, 3)
    params = init_params(k_p)

    # Case 1: B=2, T=8 -> single time block, no tail masking.
    B, T, D = 2, 8, GLOVE_DIM
    x1 = jax.random.normal(k_x1, (B, T, D), jnp.float32)
    out1 = jax.block_until_ready(rnn_forward(x1, params))
    ref1 = rnn_forward_ref(x1, params)
    assert out1.shape == (B, 1)
    assert jnp.allclose(out1, ref1, atol=2e-2), (out1, ref1)   # bf16 MXU operands

    # Case 2: B=2, T=20, t_blk=8 -> multiple time blocks + masked tail steps.
    T2 = 20
    x2 = jax.random.normal(k_x2, (B, T2, D), jnp.float32)
    out2 = jax.block_until_ready(rnn_forward(x2, params, t_blk=8))
    ref2 = rnn_forward_ref(x2, params)
    assert out2.shape == (B, 1)
    assert jnp.allclose(out2, ref2, atol=2e-2), (out2, ref2)

    print("KERNEL_OK")
</pallas_src>

<mosaic_0001>
module attributes {stable_mosaic.version = 11 : i64} {
  func.func @_gru_fused_kernel(%arg0: i32, %arg1: memref<64x128xbf16, #tpu.memory_space<vmem>>, %arg2: memref<128x384xbf16, #tpu.memory_space<vmem>>, %arg3: memref<1x384xf32, #tpu.memory_space<vmem>>, %arg4: memref<128x384xf32, #tpu.memory_space<vmem>>, %arg5: memref<1x128xf32, #tpu.memory_space<vmem>>, %arg6: memref<128x128xf32, #tpu.memory_space<vmem>>, %arg7: memref<1x128xf32, #tpu.memory_space<vmem>>, %arg8: memref<8x128xf32, #tpu.memory_space<vmem>>, %arg9: memref<8x128xf32, #tpu.memory_space<vmem>>, %arg10: memref<64x384xf32, #tpu.memory_space<vmem>>) attributes {dimension_semantics = [#tpu.dimension_semantics<arbitrary>], iteration_bounds = array<i64: 1>, scalar_prefetch = 0 : i64, scratch_operands = 2 : i64, tpu.core_type = #tpu.core_type<tc>, window_params = [{transform_indices = @transform_0, window_bounds = array<i64: 64, 128>}, {pipeline_mode = #tpu.pipeline_mode<synchronous>, transform_indices = @transform_1, window_bounds = array<i64: 128, 384>}, {pipeline_mode = #tpu.pipeline_mode<synchronous>, transform_indices = @transform_2, window_bounds = array<i64: 1, 384>}, {pipeline_mode = #tpu.pipeline_mode<synchronous>, transform_indices = @transform_3, window_bounds = array<i64: 128, 384>}, {pipeline_mode = #tpu.pipeline_mode<synchronous>, transform_indices = @transform_4, window_bounds = array<i64: 1, 128>}, {pipeline_mode = #tpu.pipeline_mode<synchronous>, transform_indices = @transform_5, window_bounds = array<i64: 128, 128>}, {pipeline_mode = #tpu.pipeline_mode<synchronous>, transform_indices = @transform_6, window_bounds = array<i64: 1, 128>}, {pipeline_mode = #tpu.pipeline_mode<synchronous>, transform_indices = @transform_7, window_bounds = array<i64: 8, 128>}]} {
    %c0_i32 = arith.constant 0 : i32
    %0 = arith.cmpi eq, %arg0, %c0_i32 : i32
    %1 = arith.extui %0 : i1 to i32
    %c0_i32_0 = arith.constant 0 : i32
    %2 = arith.cmpi ne, %1, %c0_i32_0 : i32
    scf.if %2 {
      %cst_67 = arith.constant 0.000000e+00 : f32
      %279 = vector.broadcast %cst_67 : f32 to vector<8x128xf32>
      %c0_68 = arith.constant 0 : index
      %c0_69 = arith.constant 0 : index
      %280 = vector.load %arg9[%c0_68, %c0_69] : memref<8x128xf32, #tpu.memory_space<vmem>>, vector<8x128xf32>
      tpu.vector_store %arg9[%c0_68, %c0_69], %279 {strides = array<i32>} : memref<8x128xf32, #tpu.memory_space<vmem>>, vector<8x128xf32>,
    } else {
    }
    %c0 = arith.constant 0 : index
    %c0_1 = arith.constant 0 : index
    %3 = vector.load %arg2[%c0, %c0_1] : memref<128x384xbf16, #tpu.memory_space<vmem>>, vector<128x384xbf16>
    %c0_2 = arith.constant 0 : index
    %c0_3 = arith.constant 0 : index
    %4 = vector.load %arg3[%c0_2, %c0_3] : memref<1x384xf32, #tpu.memory_space<vmem>>, vector<1x384xf32>
    %c0_i32_4 = arith.constant 0 : i32
    %c64_i32 = arith.constant 64 : i32
    %5 = arith.muli %c0_i32_4, %c64_i32 : i32
    %6 = tpu.assume_multiple %5, 64 : i32
    %7 = arith.index_cast %6 : i32 to index
    %c0_5 = arith.constant 0 : index
    %8 = vector.load %arg1[%7, %c0_5] : memref<64x128xbf16, #tpu.memory_space<vmem>>, vector<64x128xbf16>
    %cst = arith.constant dense<0.000000e+00> : vector<64x384xf32>
    %9 = tpu.matmul %8, %3, %cst {dimension_numbers = #tpu.dot_dimension_numbers<[1], [0], [0], [1], [0, 0, 1, 1], [], []>} : vector<64x128xbf16>, vector<128x384xbf16>, vector<64x384xf32> -> vector<64x384xf32>
    %10 = vector.broadcast %4 : vector<1x384xf32> to vector<64x384xf32>
    %11 = arith.addf %9, %10 : vector<64x384xf32>
    %12 = arith.index_cast %6 : i32 to index
    %c0_6 = arith.constant 0 : index
    %13 = vector.load %arg10[%12, %c0_6] : memref<64x384xf32, #tpu.memory_space<vmem>>, vector<64x384xf32>
    tpu.vector_store %arg10[%12, %c0_6], %11 {strides = array<i32>} : memref<64x384xf32, #tpu.memory_space<vmem>>, vector<64x384xf32>,
    %c1_i32 = arith.constant 1 : i32
    %c0_7 = arith.constant 0 : index
    %c0_8 = arith.constant 0 : index
    %14 = vector.load %arg4[%c0_7, %c0_8] : memref<128x384xf32, #tpu.memory_space<vmem>>, vector<128x384xf32>
    %c0_9 = arith.constant 0 : index
    %c0_10 = arith.constant 0 : index
    %15 = vector.load %arg5[%c0_9, %c0_10] : memref<1x128xf32, #tpu.memory_space<vmem>>, vector<1x128xf32>
    %16 = vector.shape_cast %15 : vector<1x128xf32> to vector<1x128xf32>
    %17 = vector.broadcast %16 : vector<1x128xf32> to vector<8x128xf32>
    %c0_11 = arith.constant 0 : index
    %c0_12 = arith.constant 0 : index
    %18 = vector.load %arg9[%c0_11, %c0_12] : memref<8x128xf32, #tpu.memory_space<vmem>>, vector<8x128xf32>
    %c0_i32_13 = arith.constant 0 : i32
    %c8_i32 = arith.constant 8 : i32
    %19 = arith.muli %c0_i32_13, %c8_i32 : i32
    %20 = tpu.assume_multiple %19, 8 : i32
    %21 = arith.index_cast %20 : i32 to index
    %c0_14 = arith.constant 0 : index
    %22 = vector.load %arg10[%21, %c0_14] : memref<64x384xf32, #tpu.memory_space<vmem>>, vector<8x384xf32>
    %cst_15 = arith.constant dense<0.000000e+00> : vector<8x384xf32>
    %23 = tpu.matmul %18, %14, %cst_15 {dimension_numbers = #tpu.dot_dimension_numbers<[1], [0], [0], [1], [0, 0, 1, 1], [], []>} : vector<8x128xf32>, vector<128x384xf32>, vector<8x384xf32> -> vector<8x384xf32>
    %24 = vector.extract_strided_slice %22 {offsets = [0, 0], sizes = [8, 128], strides = [1, 1]} : vector<8x384xf32> to vector<8x128xf32>
    %25 = vector.extract_strided_slice %23 {offsets = [0, 0], sizes = [8, 128], strides = [1, 1]} : vector<8x384xf32> to vector<8x128xf32>
    %26 = arith.addf %24, %25 : vector<8x128xf32>
    %27 = arith.negf %26 : vector<8x128xf32>
    %28 = math.exp %27 : vector<8x128xf32>
    %cst_16 = arith.constant 1.000000e+00 : f32
    %29 = vector.broadcast %cst_16 : f32 to vector<8x128xf32>
    %30 = arith.addf %29, %28 : vector<8x128xf32>
    %31 = arith.divf %29, %30 : vector<8x128xf32>
    %32 = vector.extract_strided_slice %22 {offsets = [0, 128], sizes = [8, 128], strides = [1, 1]} : vector<8x384xf32> to vector<8x128xf32>
    %33 = vector.extract_strided_slice %23 {offsets = [0, 128], sizes = [8, 128], strides = [1, 1]} : vector<8x384xf32> to vector<8x128xf32>
    %34 = arith.addf %32, %33 : vector<8x128xf32>
    %35 = arith.negf %34 : vector<8x128xf32>
    %36 = math.exp %35 : vector<8x128xf32>
    %cst_17 = arith.constant 1.000000e+00 : f32
    %37 = vector.broadcast %cst_17 : f32 to vector<8x128xf32>
    %38 = arith.addf %37, %36 : vector<8x128xf32>
    %39 = arith.divf %37, %38 : vector<8x128xf32>
    %40 = vector.extract_strided_slice %22 {offsets = [0, 256], sizes = [8, 128], strides = [1, 1]} : vector<8x384xf32> to vector<8x128xf32>
    %41 = vector.extract_strided_slice %23 {offsets = [0, 256], sizes = [8, 128], strides = [1, 1]} : vector<8x384xf32> to vector<8x128xf32>
    %42 = arith.addf %41, %17 : vector<8x128xf32>
    %43 = arith.mulf %31, %42 : vector<8x128xf32>
    %44 = arith.addf %40, %43 : vector<8x128xf32>
    %45 = math.tanh %44 : vector<8x128xf32>
    %cst_18 = arith.constant 1.000000e+00 : f32
    %46 = vector.broadcast %cst_18 : f32 to vector<8x128xf32>
    %47 = arith.subf %46, %39 : vector<8x128xf32>
    %48 = arith.mulf %47, %45 : vector<8x128xf32>
    %49 = arith.mulf %39, %18 : vector<8x128xf32>
    %50 = arith.addf %48, %49 : vector<8x128xf32>
    %c1_i32_19 = arith.constant 1 : i32
    %c8_i32_20 = arith.constant 8 : i32
    %51 = arith.muli %c1_i32_19, %c8_i32_20 : i32
    %52 = tpu.assume_multiple %51, 8 : i32
    %53 = arith.index_cast %52 : i32 to index
    %c0_21 = arith.constant 0 : index
    %54 = vector.load %arg10[%53, %c0_21] : memref<64x384xf32, #tpu.memory_space<vmem>>, vector<8x384xf32>
    %cst_22 = arith.constant dense<0.000000e+00> : vector<8x384xf32>
    %55 = tpu.matmul %50, %14, %cst_22 {dimension_numbers = #tpu.dot_dimension_numbers<[1], [0], [0], [1], [0, 0, 1, 1], [], []>} : vector<8x128xf32>, vector<128x384xf32>, vector<8x384xf32> -> vector<8x384xf32>
    %56 = vector.extract_strided_slice %54 {offsets = [0, 0], sizes = [8, 128], strides = [1, 1]} : vector<8x384xf32> to vector<8x128xf32>
    %57 = vector.extract_strided_slice %55 {offsets = [0, 0], sizes = [8, 128], strides = [1, 1]} : vector<8x384xf32> to vector<8x128xf32>
    %58 = arith.addf %56, %57 : vector<8x128xf32>
    %59 = arith.negf %58 : vector<8x128xf32>
    %60 = math.exp %59 : vector<8x128xf32>
    %cst_23 = arith.constant 1.000000e+00 : f32
    %61 = vector.broadcast %cst_23 : f32 to vector<8x128xf32>
    %62 = arith.addf %61, %60 : vector<8x128xf32>
    %63 = arith.divf %61, %62 : vector<8x128xf32>
    %64 = vector.extract_strided_slice %54 {offsets = [0, 128], sizes = [8, 128], strides = [1, 1]} : vector<8x384xf32> to vector<8x128xf32>
    %65 = vector.extract_strided_slice %55 {offsets = [0, 128], sizes = [8, 128], strides = [1, 1]} : vector<8x384xf32> to vector<8x128xf32>
    %66 = arith.addf %64, %65 : vector<8x128xf32>
    %67 = arith.negf %66 : vector<8x128xf32>
    %68 = math.exp %67 : vector<8x128xf32>
    %cst_24 = arith.constant 1.000000e+00 : f32
    %69 = vector.broadcast %cst_24 : f32 to vector<8x128xf32>
    %70 = arith.addf %69, %68 : vector<8x128xf32>
    %71 = arith.divf %69, %70 : vector<8x128xf32>
    %72 = vector.extract_strided_slice %54 {offsets = [0, 256], sizes = [8, 128], strides = [1, 1]} : vector<8x384xf32> to vector<8x128xf32>
    %73 = vector.extract_strided_slice %55 {offsets = [0, 256], sizes = [8, 128], strides = [1, 1]} : vector<8x384xf32> to vector<8x128xf32>
    %74 = arith.addf %73, %17 : vector<8x128xf32>
    %75 = arith.mulf %63, %74 : vector<8x128xf32>
    %76 = arith.addf %72, %75 : vector<8x128xf32>
    %77 = math.tanh %76 : vector<8x128xf32>
    %cst_25 = arith.constant 1.000000e+00 : f32
    %78 = vector.broadcast %cst_25 : f32 to vector<8x128xf32>
    %79 = arith.subf %78, %71 : vector<8x128xf32>
    %80 = arith.mulf %79, %77 : vector<8x128xf32>
    %81 = arith.mulf %71, %50 : vector<8x128xf32>
    %82 = arith.addf %80, %81 : vector<8x128xf32>
    %c2_i32 = arith.constant 2 : i32
    %c8_i32_26 = arith.constant 8 : i32
    %83 = arith.muli %c2_i32, %c8_i32_26 : i32
    %84 = tpu.assume_multiple %83, 8 : i32
    %85 = arith.index_cast %84 : i32 to index
    %c0_27 = arith.constant 0 : index
    %86 = vector.load %arg10[%85, %c0_27] : memref<64x384xf32, #tpu.memory_space<vmem>>, vector<8x384xf32>
    %cst_28 = arith.constant dense<0.000000e+00> : vector<8x384xf32>
    %87 = tpu.matmul %82, %14, %cst_28 {dimension_numbers = #tpu.dot_dimension_numbers<[1], [0], [0], [1], [0, 0, 1, 1], [], []>} : vector<8x128xf32>, vector<128x384xf32>, vector<8x384xf32> -> vector<8x384xf32>
    %88 = vector.extract_strided_slice %86 {offsets = [0, 0], sizes = [8, 128], strides = [1, 1]} : vector<8x384xf32> to vector<8x128xf32>
    %89 = vector.extract_strided_slice %87 {offsets = [0, 0], sizes = [8, 128], strides = [1, 1]} : vector<8x384xf32> to vector<8x128xf32>
    %90 = arith.addf %88, %89 : vector<8x128xf32>
    %91 = arith.negf %90 : vector<8x128xf32>
    %92 = math.exp %91 : vector<8x128xf32>
    %cst_29 = arith.constant 1.000000e+00 : f32
    %93 = vector.broadcast %cst_29 : f32 to vector<8x128xf32>
    %94 = arith.addf %93, %92 : vector<8x128xf32>
    %95 = arith.divf %93, %94 : vector<8x128xf32>
    %96 = vector.extract_strided_slice %86 {offsets = [0, 128], sizes = [8, 128], strides = [1, 1]} : vector<8x384xf32> to vector<8x128xf32>
    %97 = vector.extract_strided_slice %87 {offsets = [0, 128], sizes = [8, 128], strides = [1, 1]} : vector<8x384xf32> to vector<8x128xf32>
    %98 = arith.addf %96, %97 : vector<8x128xf32>
    %99 = arith.negf %98 : vector<8x128xf32>
    %100 = math.exp %99 : vector<8x128xf32>
    %cst_30 = arith.constant 1.000000e+00 : f32
    %101 = vector.broadcast %cst_30 : f32 to vector<8x128xf32>
    %102 = arith.addf %101, %100 : vector<8x128xf32>
    %103 = arith.divf %101, %102 : vector<8x128xf32>
    %104 = vector.extract_strided_slice %86 {offsets = [0, 256], sizes = [8, 128], strides = [1, 1]} : vector<8x384xf32> to vector<8x128xf32>
    %105 = vector.extract_strided_slice %87 {offsets = [0, 256], sizes = [8, 128], strides = [1, 1]} : vector<8x384xf32> to vector<8x128xf32>
    %106 = arith.addf %105, %17 : vector<8x128xf32>
    %107 = arith.mulf %95, %106 : vector<8x128xf32>
    %108 = arith.addf %104, %107 : vector<8x128xf32>
    %109 = math.tanh %108 : vector<8x128xf32>
    %cst_31 = arith.constant 1.000000e+00 : f32
    %110 = vector.broadcast %cst_31 : f32 to vector<8x128xf32>
    %111 = arith.subf %110, %103 : vector<8x128xf32>
    %112 = arith.mulf %111, %109 : vector<8x128xf32>
    %113 = arith.mulf %103, %82 : vector<8x128xf32>
    %114 = arith.addf %112, %113 : vector<8x128xf32>
    %c3_i32 = arith.constant 3 : i32
    %c8_i32_32 = arith.constant 8 : i32
    %115 = arith.muli %c3_i32, %c8_i32_32 : i32
    %116 = tpu.assume_multiple %115, 8 : i32
    %117 = arith.index_cast %116 : i32 to index
    %c0_33 = arith.constant 0 : index
    %118 = vector.load %arg10[%117, %c0_33] : memref<64x384xf32, #tpu.memory_space<vmem>>, vector<8x384xf32>
    %cst_34 = arith.constant dense<0.000000e+00> : vector<8x384xf32>
    %119 = tpu.matmul %114, %14, %cst_34 {dimension_numbers = #tpu.dot_dimension_numbers<[1], [0], [0], [1], [0, 0, 1, 1], [], []>} : vector<8x128xf32>, vector<128x384xf32>, vector<8x384xf32> -> vector<8x384xf32>
    %120 = vector.extract_strided_slice %118 {offsets = [0, 0], sizes = [8, 128], strides = [1, 1]} : vector<8x384xf32> to vector<8x128xf32>
    %121 = vector.extract_strided_slice %119 {offsets = [0, 0], sizes = [8, 128], strides = [1, 1]} : vector<8x384xf32> to vector<8x128xf32>
    %122 = arith.addf %120, %121 : vector<8x128xf32>
    %123 = arith.negf %122 : vector<8x128xf32>
    %124 = math.exp %123 : vector<8x128xf32>
    %cst_35 = arith.constant 1.000000e+00 : f32
    %125 = vector.broadcast %cst_35 : f32 to vector<8x128xf32>
    %126 = arith.addf %125, %124 : vector<8x128xf32>
    %127 = arith.divf %125, %126 : vector<8x128xf32>
    %128 = vector.extract_strided_slice %118 {offsets = [0, 128], sizes = [8, 128], strides = [1, 1]} : vector<8x384xf32> to vector<8x128xf32>
    %129 = vector.extract_strided_slice %119 {offsets = [0, 128], sizes = [8, 128], strides = [1, 1]} : vector<8x384xf32> to vector<8x128xf32>
    %130 = arith.addf %128, %129 : vector<8x128xf32>
    %131 = arith.negf %130 : vector<8x128xf32>
    %132 = math.exp %131 : vector<8x128xf32>
    %cst_36 = arith.constant 1.000000e+00 : f32
    %133 = vector.broadcast %cst_36 : f32 to vector<8x128xf32>
    %134 = arith.addf %133, %132 : vector<8x128xf32>
    %135 = arith.divf %133, %134 : vector<8x128xf32>
    %136 = vector.extract_strided_slice %118 {offsets = [0, 256], sizes = [8, 128], strides = [1, 1]} : vector<8x384xf32> to vector<8x128xf32>
    %137 = vector.extract_strided_slice %119 {offsets = [0, 256], sizes = [8, 128], strides = [1, 1]} : vector<8x384xf32> to vector<8x128xf32>
    %138 = arith.addf %137, %17 : vector<8x128xf32>
    %139 = arith.mulf %127, %138 : vector<8x128xf32>
    %140 = arith.addf %136, %139 : vector<8x128xf32>
    %141 = math.tanh %140 : vector<8x128xf32>
    %cst_37 = arith.constant 1.000000e+00 : f32
    %142 = vector.broadcast %cst_37 : f32 to vector<8x128xf32>
    %143 = arith.subf %142, %135 : vector<8x128xf32>
    %144 = arith.mulf %143, %141 : vector<8x128xf32>
    %145 = arith.mulf %135, %114 : vector<8x128xf32>
    %146 = arith.addf %144, %145 : vector<8x128xf32>
    %c4_i32 = arith.constant 4 : i32
    %c8_i32_38 = arith.constant 8 : i32
    %147 = arith.muli %c4_i32, %c8_i32_38 : i32
    %148 = tpu.assume_multiple %147, 8 : i32
    %149 = arith.index_cast %148 : i32 to index
    %c0_39 = arith.constant 0 : index
    %150 = vector.load %arg10[%149, %c0_39] : memref<64x384xf32, #tpu.memory_space<vmem>>, vector<8x384xf32>
    %cst_40 = arith.constant dense<0.000000e+00> : vector<8x384xf32>
    %151 = tpu.matmul %146, %14, %cst_40 {dimension_numbers = #tpu.dot_dimension_numbers<[1], [0], [0], [1], [0, 0, 1, 1], [], []>} : vector<8x128xf32>, vector<128x384xf32>, vector<8x384xf32> -> vector<8x384xf32>
    %152 = vector.extract_strided_slice %150 {offsets = [0, 0], sizes = [8, 128], strides = [1, 1]} : vector<8x384xf32> to vector<8x128xf32>
    %153 = vector.extract_strided_slice %151 {offsets = [0, 0], sizes = [8, 128], strides = [1, 1]} : vector<8x384xf32> to vector<8x128xf32>
    %154 = arith.addf %152, %153 : vector<8x128xf32>
    %155 = arith.negf %154 : vector<8x128xf32>
    %156 = math.exp %155 : vector<8x128xf32>
    %cst_41 = arith.constant 1.000000e+00 : f32
    %157 = vector.broadcast %cst_41 : f32 to vector<8x128xf32>
    %158 = arith.addf %157, %156 : vector<8x128xf32>
    %159 = arith.divf %157, %158 : vector<8x128xf32>
    %160 = vector.extract_strided_slice %150 {offsets = [0, 128], sizes = [8, 128], strides = [1, 1]} : vector<8x384xf32> to vector<8x128xf32>
    %161 = vector.extract_strided_slice %151 {offsets = [0, 128], sizes = [8, 128], strides = [1, 1]} : vector<8x384xf32> to vector<8x128xf32>
    %162 = arith.addf %160, %161 : vector<8x128xf32>
    %163 = arith.negf %162 : vector<8x128xf32>
    %164 = math.exp %163 : vector<8x128xf32>
    %cst_42 = arith.constant 1.000000e+00 : f32
    %165 = vector.broadcast %cst_42 : f32 to vector<8x128xf32>
    %166 = arith.addf %165, %164 : vector<8x128xf32>
    %167 = arith.divf %165, %166 : vector<8x128xf32>
    %168 = vector.extract_strided_slice %150 {offsets = [0, 256], sizes = [8, 128], strides = [1, 1]} : vector<8x384xf32> to vector<8x128xf32>
    %169 = vector.extract_strided_slice %151 {offsets = [0, 256], sizes = [8, 128], strides = [1, 1]} : vector<8x384xf32> to vector<8x128xf32>
    %170 = arith.addf %169, %17 : vector<8x128xf32>
    %171 = arith.mulf %159, %170 : vector<8x128xf32>
    %172 = arith.addf %168, %171 : vector<8x128xf32>
    %173 = math.tanh %172 : vector<8x128xf32>
    %cst_43 = arith.constant 1.000000e+00 : f32
    %174 = vector.broadcast %cst_43 : f32 to vector<8x128xf32>
    %175 = arith.subf %174, %167 : vector<8x128xf32>
    %176 = arith.mulf %175, %173 : vector<8x128xf32>
    %177 = arith.mulf %167, %146 : vector<8x128xf32>
    %178 = arith.addf %176, %177 : vector<8x128xf32>
    %c5_i32 = arith.constant 5 : i32
    %c8_i32_44 = arith.constant 8 : i32
    %179 = arith.muli %c5_i32, %c8_i32_44 : i32
    %180 = tpu.assume_multiple %179, 8 : i32
    %181 = arith.index_cast %180 : i32 to index
    %c0_45 = arith.constant 0 : index
    %182 = vector.load %arg10[%181, %c0_45] : memref<64x384xf32, #tpu.memory_space<vmem>>, vector<8x384xf32>
    %cst_46 = arith.constant dense<0.000000e+00> : vector<8x384xf32>
    %183 = tpu.matmul %178, %14, %cst_46 {dimension_numbers = #tpu.dot_dimension_numbers<[1], [0], [0], [1], [0, 0, 1, 1], [], []>} : vector<8x128xf32>, vector<128x384xf32>, vector<8x384xf32> -> vector<8x384xf32>
    %184 = vector.extract_strided_slice %182 {offsets = [0, 0], sizes = [8, 128], strides = [1, 1]} : vector<8x384xf32> to vector<8x128xf32>
    %185 = vector.extract_strided_slice %183 {offsets = [0, 0], sizes = [8, 128], strides = [1, 1]} : vector<8x384xf32> to vector<8x128xf32>
    %186 = arith.addf %184, %185 : vector<8x128xf32>
    %187 = arith.negf %186 : vector<8x128xf32>
    %188 = math.exp %187 : vector<8x128xf32>
    %cst_47 = arith.constant 1.000000e+00 : f32
    %189 = vector.broadcast %cst_47 : f32 to vector<8x128xf32>
    %190 = arith.addf %189, %188 : vector<8x128xf32>
    %191 = arith.divf %189, %190 : vector<8x128xf32>
    %192 = vector.extract_strided_slice %182 {offsets = [0, 128], sizes = [8, 128], strides = [1, 1]} : vector<8x384xf32> to vector<8x128xf32>
    %193 = vector.extract_strided_slice %183 {offsets = [0, 128], sizes = [8, 128], strides = [1, 1]} : vector<8x384xf32> to vector<8x128xf32>
    %194 = arith.addf %192, %193 : vector<8x128xf32>
    %195 = arith.negf %194 : vector<8x128xf32>
    %196 = math.exp %195 : vector<8x128xf32>
    %cst_48 = arith.constant 1.000000e+00 : f32
    %197 = vector.broadcast %cst_48 : f32 to vector<8x128xf32>
    %198 = arith.addf %197, %196 : vector<8x128xf32>
    %199 = arith.divf %197, %198 : vector<8x128xf32>
    %200 = vector.extract_strided_slice %182 {offsets = [0, 256], sizes = [8, 128], strides = [1, 1]} : vector<8x384xf32> to vector<8x128xf32>
    %201 = vector.extract_strided_slice %183 {offsets = [0, 256], sizes = [8, 128], strides = [1, 1]} : vector<8x384xf32> to vector<8x128xf32>
    %202 = arith.addf %201, %17 : vector<8x128xf32>
    %203 = arith.mulf %191, %202 : vector<8x128xf32>
    %204 = arith.addf %200, %203 : vector<8x128xf32>
    %205 = math.tanh %204 : vector<8x128xf32>
    %cst_49 = arith.constant 1.000000e+00 : f32
    %206 = vector.broadcast %cst_49 : f32 to vector<8x128xf32>
    %207 = arith.subf %206, %199 : vector<8x128xf32>
    %208 = arith.mulf %207, %205 : vector<8x128xf32>
    %209 = arith.mulf %199, %178 : vector<8x128xf32>
    %210 = arith.addf %208, %209 : vector<8x128xf32>
    %c6_i32 = arith.constant 6 : i32
    %c8_i32_50 = arith.constant 8 : i32
    %211 = arith.muli %c6_i32, %c8_i32_50 : i32
    %212 = tpu.assume_multiple %211, 8 : i32
    %213 = arith.index_cast %212 : i32 to index
    %c0_51 = arith.constant 0 : index
    %214 = vector.load %arg10[%213, %c0_51] : memref<64x384xf32, #tpu.memory_space<vmem>>, vector<8x384xf32>
    %cst_52 = arith.constant dense<0.000000e+00> : vector<8x384xf32>
    %215 = tpu.matmul %210, %14, %cst_52 {dimension_numbers = #tpu.dot_dimension_numbers<[1], [0], [0], [1], [0, 0, 1, 1], [], []>} : vector<8x128xf32>, vector<128x384xf32>, vector<8x384xf32> -> vector<8x384xf32>
    %216 = vector.extract_strided_slice %214 {offsets = [0, 0], sizes = [8, 128], strides = [1, 1]} : vector<8x384xf32> to vector<8x128xf32>
    %217 = vector.extract_strided_slice %215 {offsets = [0, 0], sizes = [8, 128], strides = [1, 1]} : vector<8x384xf32> to vector<8x128xf32>
    %218 = arith.addf %216, %217 : vector<8x128xf32>
    %219 = arith.negf %218 : vector<8x128xf32>
    %220 = math.exp %219 : vector<8x128xf32>
    %cst_53 = arith.constant 1.000000e+00 : f32
    %221 = vector.broadcast %cst_53 : f32 to vector<8x128xf32>
    %222 = arith.addf %221, %220 : vector<8x128xf32>
    %223 = arith.divf %221, %222 : vector<8x128xf32>
    %224 = vector.extract_strided_slice %214 {offsets = [0, 128], sizes = [8, 128], strides = [1, 1]} : vector<8x384xf32> to vector<8x128xf32>
    %225 = vector.extract_strided_slice %215 {offsets = [0, 128], sizes = [8, 128], strides = [1, 1]} : vector<8x384xf32> to vector<8x128xf32>
    %226 = arith.addf %224, %225 : vector<8x128xf32>
    %227 = arith.negf %226 : vector<8x128xf32>
    %228 = math.exp %227 : vector<8x128xf32>
    %cst_54 = arith.constant 1.000000e+00 : f32
    %229 = vector.broadcast %cst_54 : f32 to vector<8x128xf32>
    %230 = arith.addf %229, %228 : vector<8x128xf32>
    %231 = arith.divf %229, %230 : vector<8x128xf32>
    %232 = vector.extract_strided_slice %214 {offsets = [0, 256], sizes = [8, 128], strides = [1, 1]} : vector<8x384xf32> to vector<8x128xf32>
    %233 = vector.extract_strided_slice %215 {offsets = [0, 256], sizes = [8, 128], strides = [1, 1]} : vector<8x384xf32> to vector<8x128xf32>
    %234 = arith.addf %233, %17 : vector<8x128xf32>
    %235 = arith.mulf %223, %234 : vector<8x128xf32>
    %236 = arith.addf %232, %235 : vector<8x128xf32>
    %237 = math.tanh %236 : vector<8x128xf32>
    %cst_55 = arith.constant 1.000000e+00 : f32
    %238 = vector.broadcast %cst_55 : f32 to vector<8x128xf32>
    %239 = arith.subf %238, %231 : vector<8x128xf32>
    %240 = arith.mulf %239, %237 : vector<8x128xf32>
    %241 = arith.mulf %231, %210 : vector<8x128xf32>
    %242 = arith.addf %240, %241 : vector<8x128xf32>
    %c7_i32 = arith.constant 7 : i32
    %c8_i32_56 = arith.constant 8 : i32
    %243 = arith.muli %c7_i32, %c8_i32_56 : i32
    %244 = tpu.assume_multiple %243, 8 : i32
    %245 = arith.index_cast %244 : i32 to index
    %c0_57 = arith.constant 0 : index
    %246 = vector.load %arg10[%245, %c0_57] : memref<64x384xf32, #tpu.memory_space<vmem>>, vector<8x384xf32>
    %cst_58 = arith.constant dense<0.000000e+00> : vector<8x384xf32>
    %247 = tpu.matmul %242, %14, %cst_58 {dimension_numbers = #tpu.dot_dimension_numbers<[1], [0], [0], [1], [0, 0, 1, 1], [], []>} : vector<8x128xf32>, vector<128x384xf32>, vector<8x384xf32> -> vector<8x384xf32>
    %248 = vector.extract_strided_slice %246 {offsets = [0, 0], sizes = [8, 128], strides = [1, 1]} : vector<8x384xf32> to vector<8x128xf32>
    %249 = vector.extract_strided_slice %247 {offsets = [0, 0], sizes = [8, 128], strides = [1, 1]} : vector<8x384xf32> to vector<8x128xf32>
    %250 = arith.addf %248, %249 : vector<8x128xf32>
    %251 = arith.negf %250 : vector<8x128xf32>
    %252 = math.exp %251 : vector<8x128xf32>
    %cst_59 = arith.constant 1.000000e+00 : f32
    %253 = vector.broadcast %cst_59 : f32 to vector<8x128xf32>
    %254 = arith.addf %253, %252 : vector<8x128xf32>
    %255 = arith.divf %253, %254 : vector<8x128xf32>
    %256 = vector.extract_strided_slice %246 {offsets = [0, 128], sizes = [8, 128], strides = [1, 1]} : vector<8x384xf32> to vector<8x128xf32>
    %257 = vector.extract_strided_slice %247 {offsets = [0, 128], sizes = [8, 128], strides = [1, 1]} : vector<8x384xf32> to vector<8x128xf32>
    %258 = arith.addf %256, %257 : vector<8x128xf32>
    %259 = arith.negf %258 : vector<8x128xf32>
    %260 = math.exp %259 : vector<8x128xf32>
    %cst_60 = arith.constant 1.000000e+00 : f32
    %261 = vector.broadcast %cst_60 : f32 to vector<8x128xf32>
    %262 = arith.addf %261, %260 : vector<8x128xf32>
    %263 = arith.divf %261, %262 : vector<8x128xf32>
    %264 = vector.extract_strided_slice %246 {offsets = [0, 256], sizes = [8, 128], strides = [1, 1]} : vector<8x384xf32> to vector<8x128xf32>
    %265 = vector.extract_strided_slice %247 {offsets = [0, 256], sizes = [8, 128], strides = [1, 1]} : vector<8x384xf32> to vector<8x128xf32>
    %266 = arith.addf %265, %17 : vector<8x128xf32>
    %267 = arith.mulf %255, %266 : vector<8x128xf32>
    %268 = arith.addf %264, %267 : vector<8x128xf32>
    %269 = math.tanh %268 : vector<8x128xf32>
    %cst_61 = arith.constant 1.000000e+00 : f32
    %270 = vector.broadcast %cst_61 : f32 to vector<8x128xf32>
    %271 = arith.subf %270, %263 : vector<8x128xf32>
    %272 = arith.mulf %271, %269 : vector<8x128xf32>
    %273 = arith.mulf %263, %242 : vector<8x128xf32>
    %274 = arith.addf %272, %273 : vector<8x128xf32>
    %c8_i32_62 = arith.constant 8 : i32
    %c0_63 = arith.constant 0 : index
    %c0_64 = arith.constant 0 : index
    %275 = vector.load %arg9[%c0_63, %c0_64] : memref<8x128xf32, #tpu.memory_space<vmem>>, vector<8x128xf32>
    tpu.vector_store %arg9[%c0_63, %c0_64], %274 {strides = array<i32>} : memref<8x128xf32, #tpu.memory_space<vmem>>, vector<8x128xf32>,
    %c0_i32_65 = arith.constant 0 : i32
    %276 = arith.cmpi eq, %arg0, %c0_i32_65 : i32
    %277 = arith.extui %276 : i1 to i32
    %c0_i32_66 = arith.constant 0 : i32
    %278 = arith.cmpi ne, %277, %c0_i32_66 : i32
    scf.if %278 {
      %c0_67 = arith.constant 0 : index
      %c0_68 = arith.constant 0 : index
      %279 = vector.load %arg6[%c0_67, %c0_68] : memref<128x128xf32, #tpu.memory_space<vmem>>, vector<128x128xf32>
      %cst_69 = arith.constant dense<0.000000e+00> : vector<8x128xf32>
      %280 = tpu.matmul %274, %279, %cst_69 {dimension_numbers = #tpu.dot_dimension_numbers<[1], [0], [0], [1], [0, 0, 1, 1], [], []>} : vector<8x128xf32>, vector<128x128xf32>, vector<8x128xf32> -> vector<8x128xf32>
      %c0_70 = arith.constant 0 : index
      %c0_71 = arith.constant 0 : index
      %281 = vector.load %arg7[%c0_70, %c0_71] : memref<1x128xf32, #tpu.memory_space<vmem>>, vector<1x128xf32>
      %282 = vector.broadcast %281 : vector<1x128xf32> to vector<8x128xf32>
      %283 = arith.addf %280, %282 : vector<8x128xf32>
      %284 = arith.negf %283 : vector<8x128xf32>
      %285 = math.exp %284 : vector<8x128xf32>
      %cst_72 = arith.constant 1.000000e+00 : f32
      %286 = vector.broadcast %cst_72 : f32 to vector<8x128xf32>
      %287 = arith.addf %286, %285 : vector<8x128xf32>
      %288 = arith.divf %286, %287 : vector<8x128xf32>
      %c0_73 = arith.constant 0 : index
      %c0_74 = arith.constant 0 : index
      %289 = vector.load %arg8[%c0_73, %c0_74] : memref<8x128xf32, #tpu.memory_space<vmem>>, vector<8x128xf32>
      tpu.vector_store %arg8[%c0_73, %c0_74], %288 {strides = array<i32>} : memref<8x128xf32, #tpu.memory_space<vmem>>, vector<8x128xf32>,
    } else {
    }
    return
  }
  func.func @transform_0(%arg0: i32) -> (i32, i32) {
    %c0_i32 = arith.constant 0 : i32
    %c0_i32_0 = arith.constant 0 : i32
    return %arg0, %c0_i32 : i32, i32
  }
  func.func @transform_1(%arg0: i32) -> (i32, i32) {
    %c0_i32 = arith.constant 0 : i32
    %c0_i32_0 = arith.constant 0 : i32
    %c0_i32_1 = arith.constant 0 : i32
    return %c0_i32, %c0_i32_0 : i32, i32
  }
  func.func @transform_2(%arg0: i32) -> (i32, i32) {
    %c0_i32 = arith.constant 0 : i32
    %c0_i32_0 = arith.constant 0 : i32
    %c0_i32_1 = arith.constant 0 : i32
    return %c0_i32, %c0_i32_0 : i32, i32
  }
  func.func @transform_3(%arg0: i32) -> (i32, i32) {
    %c0_i32 = arith.constant 0 : i32
    %c0_i32_0 = arith.constant 0 : i32
    %c0_i32_1 = arith.constant 0 : i32
    return %c0_i32, %c0_i32_0 : i32, i32
  }
  func.func @transform_4(%arg0: i32) -> (i32, i32) {
    %c0_i32 = arith.constant 0 : i32
    %c0_i32_0 = arith.constant 0 : i32
    %c0_i32_1 = arith.constant 0 : i32
    return %c0_i32, %c0_i32_0 : i32, i32
  }
  func.func @transform_5(%arg0: i32) -> (i32, i32) {
    %c0_i32 = arith.constant 0 : i32
    %c0_i32_0 = arith.constant 0 : i32
    %c0_i32_1 = arith.constant 0 : i32
    return %c0_i32, %c0_i32_0 : i32, i32
  }
  func.func @transform_6(%arg0: i32) -> (i32, i32) {
    %c0_i32 = arith.constant 0 : i32
    %c0_i32_0 = arith.constant 0 : i32
    %c0_i32_1 = arith.constant 0 : i32
    return %c0_i32, %c0_i32_0 : i32, i32
  }
  func.func @transform_7(%arg0: i32) -> (i32, i32) {
    %c0_i32 = arith.constant 0 : i32
    %c0_i32_0 = arith.constant 0 : i32
    %c0_i32_1 = arith.constant 0 : i32
    return %c0_i32, %c0_i32_0 : i32, i32
  }
}

</mosaic_0001>

<llo_original>
// kernel: tpu_custom_call.1
$region0: #{tpu_custom_call.1}
  #allocation0 [shape = 'u32[]', space=smem, size = 0x4, offset = 0x4, fixed_abs, tag = 'smem constant byte address 0x4 - core index']
  #allocation1 [shape = 'u32[72,128]{1,0:T(1,128)}', space=vmem, size = 0x9000, scoped, tag = 'internal scratch']
  #allocation2 [shape = 'f32[8,128]{1,0:T(8,128)}', space=vmem, size = 0x1000, scoped, tag = 'scratch operand']
  #allocation3 [shape = 'f32[64,384]{1,0:T(8,128)}', space=vmem, size = 0x18000, scoped, tag = 'scratch operand']
  %s0 = inlined_call_operand.hbm [shape: bf16[64,128], index: 0, kind: input, shape index: {}]
  %s1 = inlined_call_operand.hbm [shape: bf16[128,384], index: 1, kind: input, shape index: {}]
  %s2 = inlined_call_operand.hbm [shape: f32[1,384], index: 2, kind: input, shape index: {}]
  %s3 = inlined_call_operand.hbm [shape: f32[128,384], index: 3, kind: input, shape index: {}]
  %s4 = inlined_call_operand.vmem [shape: f32[1,128], index: 4, kind: input, shape index: {}]
  %s5 = inlined_call_operand.hbm [shape: f32[128,128], index: 5, kind: input, shape index: {}]
  %s6 = inlined_call_operand.vmem [shape: f32[1,128], index: 6, kind: input, shape index: {}]
  %s7 = inlined_call_operand.hbm [shape: f32[8,128], index: 7, kind: output, shape index: {}]
  %s8 = sld [smem:[#allocation0]]
  $region66: #{tpu_custom_call.1} parent=0
    _
  %s10 = ssub.s32 1, %s8
  %s11 = scalar_select 0, %s10, %s8
  $region1: #{tpu_custom_call.1} parent=0
    #allocation4 [shape = 'u8[16384]{0}', space=vmem, size = 0x4000, scoped, tag = 'input window, operand 0, single buffered']
    #allocation5 [shape = 's32[1]{0}', space=sflag, size = 0x4, scoped, tag = 'scoped memory for tpu_custom_call.1']
    #allocation6 [shape = 's32[1]{0}', space=sflag, size = 0x4, scoped, tag = 'scoped memory for tpu_custom_call.1']
    #allocation7 [shape = 'u8[98304]{0}', space=vmem, size = 0x18000, scoped, tag = 'input window, operand 1, single buffered']
    #allocation8 [shape = 's32[1]{0}', space=sflag, size = 0x4, scoped, tag = 'scoped memory for tpu_custom_call.1']
    #allocation9 [shape = 'u8[1536]{0}', space=vmem, size = 0x800, scoped, tag = 'input window, operand 2, single buffered']
    #allocation10 [shape = 'u8[196608]{0}', space=vmem, size = 0x30000, scoped, tag = 'input window, operand 3, single buffered']
    #allocation11 [shape = 's32[1]{0}', space=sflag, size = 0x4, scoped, tag = 'scoped memory for tpu_custom_call.1']
    #allocation12 [shape = 'u8[65536]{0}', space=vmem, size = 0x10000, scoped, tag = 'input window, operand 5, single buffered']
    #allocation13 [shape = 'u8[4096]{0}', space=vmem, size = 0x1000, scoped, tag = 'output window, operand 0, single buffered']
    %12 = vsyncpa [#allocation5], 0
    %13 = vsyncpa [#allocation8], 0
    %14 = vsyncpa [#allocation11], 0
    %15 = vsyncpa [#allocation6], 0
    // Predicated region
    $region2: #{tpu_custom_call.1} parent=1 // pred_check
      _
    $region3: #{tpu_custom_call.1} parent=1 // pred_check_branch
      %17 = sbr.rel (0) target = $region5
    $region4: #{tpu_custom_call.1} parent=1 // pred_region
      %19 = vsyncadd [#allocation5], 0
      %s20 = sshll.u32 %s0, 4
      %s21 = int_to_ptr.hbm [resolvable:$true] %s20
      %s22 = sshll.u32 [#allocation4], 4
      %s23 = int_to_ptr.vmem [resolvable:$true] %s22
      %28 = dma.hbm_to_vmem [thread:$0]  %s21, 512, %s23, [#allocation5], 64, 64, 4
    $region5: #{tpu_custom_call.1} parent=1 // pred_fallthru
      _
    // Predicated region
    $region6: #{tpu_custom_call.1} parent=1 // pred_check
      _
    $region7: #{tpu_custom_call.1} parent=1 // pred_check_branch
      %30 = sbr.rel (0) target = $region9
    $region8: #{tpu_custom_call.1} parent=1 // pred_region
      %32 = vsyncadd [#allocation8], 0
      %s33 = sshll.u32 %s1, 4
      %s34 = int_to_ptr.hbm [resolvable:$true] %s33
      %s35 = sshll.u32 [#allocation7], 4
      %s36 = int_to_ptr.vmem [resolvable:$true] %s35
      %41 = dma.hbm_to_vmem [thread:$0]  %s34, 3072, %s36, [#allocation8], 192, 192, 12
    $region9: #{tpu_custom_call.1} parent=1 // pred_fallthru
      _
    // Predicated region
    $region10: #{tpu_custom_call.1} parent=1 // pred_check
      _
    $region11: #{tpu_custom_call.1} parent=1 // pred_check_branch
      %43 = sbr.rel (0) target = $region13
    $region12: #{tpu_custom_call.1} parent=1 // pred_region
      %45 = vsyncadd [#allocation8], 0
      %s47 = sshll.u32 %s2, 4
      %s48 = int_to_ptr.hbm [resolvable:$true] %s47
      %s49 = sshll.u32 [#allocation9], 4
      %s50 = int_to_ptr.vmem [resolvable:$true] %s49
      %52 = dma.hbm_to_vmem [thread:$0]  %s48, 48, %s50, [#allocation8]
    $region13: #{tpu_custom_call.1} parent=1 // pred_fallthru
      _
    // Predicated region
    $region14: #{tpu_custom_call.1} parent=1 // pred_check
      _
    $region15: #{tpu_custom_call.1} parent=1 // pred_check_branch
      %54 = sbr.rel (0) target = $region17
    $region16: #{tpu_custom_call.1} parent=1 // pred_region
      %56 = vsyncadd [#allocation11], 0
      %s57 = sshll.u32 %s3, 4
      %s58 = int_to_ptr.hbm [resolvable:$true] %s57
      %s59 = sshll.u32 [#allocation10], 4
      %s60 = int_to_ptr.vmem [resolvable:$true] %s59
      %65 = dma.hbm_to_vmem [thread:$0]  %s58, 6144, %s60, [#allocation11], 384, 384, 24
    $region17: #{tpu_custom_call.1} parent=1 // pred_fallthru
      _
    // Predicated region
    $region18: #{tpu_custom_call.1} parent=1 // pred_check
      _
    $region19: #{tpu_custom_call.1} parent=1 // pred_check_branch
      %67 = sbr.rel (0) target = $region21
    $region20: #{tpu_custom_call.1} parent=1 // pred_region
      _
    $region21: #{tpu_custom_call.1} parent=1 // pred_fallthru
      _
    // Predicated region
    $region22: #{tpu_custom_call.1} parent=1 // pred_check
      _
    $region23: #{tpu_custom_call.1} parent=1 // pred_check_branch
      %69 = sbr.rel (0) target = $region25
    $region24: #{tpu_custom_call.1} parent=1 // pred_region
      %71 = vsyncadd [#allocation11], 0
      %s72 = sshll.u32 %s5, 4
      %s73 = int_to_ptr.hbm [resolvable:$true] %s72
      %s74 = sshll.u32 [#allocation12], 4
      %s75 = int_to_ptr.vmem [resolvable:$true] %s74
      %80 = dma.hbm_to_vmem [thread:$0]  %s73, 2048, %s75, [#allocation11], 128, 128, 8
    $region25: #{tpu_custom_call.1} parent=1 // pred_fallthru
      _
    // Predicated region
    $region26: #{tpu_custom_call.1} parent=1 // pred_check
      _
    $region27: #{tpu_custom_call.1} parent=1 // pred_check_branch
      %82 = sbr.rel (0) target = $region29
    $region28: #{tpu_custom_call.1} parent=1 // pred_region
      _
    $region29: #{tpu_custom_call.1} parent=1 // pred_fallthru
      _
    // Predicated region
    $region30: #{tpu_custom_call.1} parent=1 // pred_check
      _
    $region31: #{tpu_custom_call.1} parent=1 // pred_check_branch
      %84 = sbr.rel (0) target = $region33
    $region32: #{tpu_custom_call.1} parent=1 // pred_region
      %86 = dma.done [#allocation5], 512
    $region33: #{tpu_custom_call.1} parent=1 // pred_fallthru
      _
    // Predicated region
    $region34: #{tpu_custom_call.1} parent=1 // pred_check
      _
    $region35: #{tpu_custom_call.1} parent=1 // pred_check_branch
      %88 = sbr.rel (0) target = $region37
    $region36: #{tpu_custom_call.1} parent=1 // pred_region
      %90 = dma.done [#allocation8], 3072
    $region37: #{tpu_custom_call.1} parent=1 // pred_fallthru
      _
    // Predicated region
    $region38: #{tpu_custom_call.1} parent=1 // pred_check
      _
    $region39: #{tpu_custom_call.1} parent=1 // pred_check_branch
      %92 = sbr.rel (0) target = $region41
    $region40: #{tpu_custom_call.1} parent=1 // pred_region
      %94 = dma.done [#allocation8], 48
    $region41: #{tpu_custom_call.1} parent=1 // pred_fallthru
      _
    // Predicated region
    $region42: #{tpu_custom_call.1} parent=1 // pred_check
      _
    $region43: #{tpu_custom_call.1} parent=1 // pred_check_branch
      %96 = sbr.rel (0) target = $region45
    $region44: #{tpu_custom_call.1} parent=1 // pred_region
      %98 = dma.done [#allocation11], 6144
    $region45: #{tpu_custom_call.1} parent=1 // pred_fallthru
      _
    // Predicated region
    $region46: #{tpu_custom_call.1} parent=1 // pred_check
      _
    $region47: #{tpu_custom_call.1} parent=1 // pred_check_branch
      %100 = sbr.rel (0) target = $region49
    $region48: #{tpu_custom_call.1} parent=1 // pred_region
      %102 = dma.done [#allocation11], 2048
    $region49: #{tpu_custom_call.1} parent=1 // pred_fallthru
      _
    %p103 = scmp.eq.s32.totalorder 0, 0
    // Predicated region
    $region50: #{tpu_custom_call.1} parent=1 // pred_check
      %p104 = pneg %p103
    $region51: #{tpu_custom_call.1} parent=1 // pred_check_branch
      %106 = sbr.rel (%p104) target = $region53
    $region52: #{tpu_custom_call.1} parent=1 // pred_region
      %107 = vst [vmem:[#allocation2] sm:$0xff] 0.0
    $region53: #{tpu_custom_call.1} parent=1 // pred_fallthru
      _
    %v108 = vld [vmem:[#allocation7] sm:$0xff]
    %v109 = vld [vmem:[#allocation7 + $0x8] sm:$0xf]
    %v110 = vld [vmem:[#allocation7 + $0xc] sm:$0xff]
    %v111 = vld [vmem:[#allocation7 + $0x14] sm:$0xf]
    %v112 = vld [vmem:[#allocation7 + $0x18] sm:$0xff]
    %v113 = vld [vmem:[#allocation7 + $0x20] sm:$0xf]
    %v114 = vld [vmem:[#allocation7 + $0x24] sm:$0xff]
    %v115 = vld [vmem:[#allocation7 + $0x2c] sm:$0xf]
    %v116 = vld [vmem:[#allocation7 + $0x30] sm:$0xff]
    %v117 = vld [vmem:[#allocation7 + $0x38] sm:$0xf]
    %v118 = vld [vmem:[#allocation7 + $0x3c] sm:$0xff]
    %v119 = vld [vmem:[#allocation7 + $0x44] sm:$0xf]
    %v120 = vld [vmem:[#allocation7 + $0x48] sm:$0xff]
    %v121 = vld [vmem:[#allocation7 + $0x50] sm:$0xf]
    %v122 = vld [vmem:[#allocation7 + $0x54] sm:$0xff]
    %v123 = vld [vmem:[#allocation7 + $0x5c] sm:$0xf]
    %v124 = vld [vmem:[#allocation7 + $0x60] sm:$0xff]
    %v125 = vld [vmem:[#allocation7 + $0x68] sm:$0xf]
    %v126 = vld [vmem:[#allocation7 + $0x6c] sm:$0xff]
    %v127 = vld [vmem:[#allocation7 + $0x74] sm:$0xf]
    %v128 = vld [vmem:[#allocation7 + $0x78] sm:$0xff]
    %v129 = vld [vmem:[#allocation7 + $0x80] sm:$0xf]
    %v130 = vld [vmem:[#allocation7 + $0x84] sm:$0xff]
    %v131 = vld [vmem:[#allocation7 + $0x8c] sm:$0xf]
    %v132 = vld [vmem:[#allocation7 + $0x90] sm:$0xff]
    %v133 = vld [vmem:[#allocation7 + $0x98] sm:$0xf]
    %v134 = vld [vmem:[#allocation7 + $0x9c] sm:$0xff]
    %v135 = vld [vmem:[#allocation7 + $0xa4] sm:$0xf]
    %v136 = vld [vmem:[#allocation7 + $0xa8] sm:$0xff]
    %v137 = vld [vmem:[#allocation7 + $0xb0] sm:$0xf]
    %v138 = vld [vmem:[#allocation7 + $0xb4] sm:$0xff]
    %v139 = vld [vmem:[#allocation7 + $0xbc] sm:$0xf]
    %v140 = vld [vmem:[#allocation9] sm:$0x7]
    %v141 = vld [vmem:[#allocation4] sm:$0xf]
    %v142 = vld [vmem:[#allocation4 + $0x4] sm:$0xf]
    %v143 = vld [vmem:[#allocation4 + $0x8] sm:$0xf]
    %v144 = vld [vmem:[#allocation4 + $0xc] sm:$0xf]
    %v145 = vld [vmem:[#allocation4 + $0x10] sm:$0xf]
    %v146 = vld [vmem:[#allocation4 + $0x14] sm:$0xf]
    %v147 = vld [vmem:[#allocation4 + $0x18] sm:$0xf]
    %v148 = vld [vmem:[#allocation4 + $0x1c] sm:$0xf]
    %v150 = vperm.slane %v140, 0
    %v151 = vperm.slane %v140, 1
    %v152 = vperm.slane %v140, 2
    %v164 = vunpack.c.l.b16 %v141
    %v165 = vunpack.c.l.b16 %v142
    %v166 = vunpack.c.l.b16 %v143
    %v167 = vunpack.c.l.b16 %v144
    %v168 = vunpack.c.l.b16 %v145
    %v169 = vunpack.c.l.b16 %v146
    %v170 = vunpack.c.l.b16 %v147
    %v171 = vunpack.c.l.b16 %v148
    %v172 = vpack.c.b16 %v165, %v164
    %v173 = vpack.c.b16 %v167, %v166
    %v174 = vpack.c.b16 %v169, %v168
    %v175 = vpack.c.b16 %v171, %v170
    %v212 = vunpack.c.l.b16 %v108
    %v213 = vunpack.c.h.b16 %v108
    %v214 = vunpack.c.l.b16 %v109
    %v215 = vunpack.c.l.b16 %v110
    %v216 = vunpack.c.h.b16 %v110
    %v217 = vunpack.c.l.b16 %v111
    %v218 = vunpack.c.l.b16 %v112
    %v219 = vunpack.c.h.b16 %v112
    %v220 = vunpack.c.l.b16 %v113
    %v221 = vunpack.c.l.b16 %v114
    %v222 = vunpack.c.h.b16 %v114
    %v223 = vunpack.c.l.b16 %v115
    %v224 = vunpack.c.l.b16 %v116
    %v225 = vunpack.c.h.b16 %v116
    %v226 = vunpack.c.l.b16 %v117
    %v227 = vunpack.c.l.b16 %v118
    %v228 = vunpack.c.h.b16 %v118
    %v229 = vunpack.c.l.b16 %v119
    %v230 = vunpack.c.l.b16 %v120
    %v231 = vunpack.c.h.b16 %v120
    %v232 = vunpack.c.l.b16 %v121
    %v233 = vunpack.c.l.b16 %v122
    %v234 = vunpack.c.h.b16 %v122
    %v235 = vunpack.c.l.b16 %v123
    %v236 = vunpack.c.l.b16 %v124
    %v237 = vunpack.c.h.b16 %v124
    %v238 = vunpack.c.l.b16 %v125
    %v239 = vunpack.c.l.b16 %v126
    %v240 = vunpack.c.h.b16 %v126
    %v241 = vunpack.c.l.b16 %v127
    %v242 = vunpack.c.l.b16 %v128
    %v243 = vunpack.c.h.b16 %v128
    %v244 = vunpack.c.l.b16 %v129
    %v245 = vunpack.c.l.b16 %v130
    %v246 = vunpack.c.h.b16 %v130
    %v247 = vunpack.c.l.b16 %v131
    %v248 = vunpack.c.l.b16 %v132
    %v249 = vunpack.c.h.b16 %v132
    %v250 = vunpack.c.l.b16 %v133
    %v251 = vunpack.c.l.b16 %v134
    %v252 = vunpack.c.h.b16 %v134
    %v253 = vunpack.c.l.b16 %v135
    %v254 = vunpack.c.l.b16 %v136
    %v255 = vunpack.c.h.b16 %v136
    %v256 = vunpack.c.l.b16 %v137
    %v257 = vunpack.c.l.b16 %v138
    %v258 = vunpack.c.h.b16 %v138
    %v259 = vunpack.c.l.b16 %v139
    %v260 = vpack.c.b16 %v215, %v212
    %v261 = vpack.c.b16 %v216, %v213
    %v262 = vpack.c.b16 %v217, %v214
    %v263 = vpack.c.b16 %v221, %v218
    %v264 = vpack.c.b16 %v222, %v219
    %v265 = vpack.c.b16 %v223, %v220
    %v266 = vpack.c.b16 %v227, %v224
    %v267 = vpack.c.b16 %v228, %v225
    %v268 = vpack.c.b16 %v229, %v226
    %v269 = vpack.c.b16 %v233, %v230
    %v270 = vpack.c.b16 %v234, %v231
    %v271 = vpack.c.b16 %v235, %v232
    %v272 = vpack.c.b16 %v239, %v236
    %v273 = vpack.c.b16 %v240, %v237
    %v274 = vpack.c.b16 %v241, %v238
    %v275 = vpack.c.b16 %v245, %v242
    %v276 = vpack.c.b16 %v246, %v243
    %v277 = vpack.c.b16 %v247, %v244
    %v278 = vpack.c.b16 %v251, %v248
    %v279 = vpack.c.b16 %v252, %v249
    %v280 = vpack.c.b16 %v253, %v250
    %v281 = vpack.c.b16 %v257, %v254
    %v282 = vpack.c.b16 %v258, %v255
    %v283 = vpack.c.b16 %v259, %v256
    %308 = vmatpush.bf16.msra.mxu0 %v281
    %309 = vmatpush.bf16.msra.mxu0 %v278
    %310 = vmatpush.bf16.msra.mxu0 %v275
    %311 = vmatpush.bf16.msra.mxu0 %v272
    %312 = vmatpush.bf16.msra.mxu0 %v269
    %313 = vmatpush.bf16.msra.mxu0 %v266
    %314 = vmatpush.bf16.msra.mxu0 %v263
    %315 = vmatpush.bf16.msra.mxu0 %v260
    %316 = vmatmul.bf16.gmra.mxu0 %v172
    %v317 = vpop.f32.mrf.mxu0
    %v318 = vadd.f32 %v150, %v317
    %v319 = vpop.f32.mrf.mxu0
    %v320 = vadd.f32 %v150, %v319
    %321 = vmatmul.bf16.gmra.mxu0 %v173
    %v322 = vpop.f32.mrf.mxu0
    %v323 = vadd.f32 %v150, %v322
    %v324 = vpop.f32.mrf.mxu0
    %v325 = vadd.f32 %v150, %v324
    %326 = vmatmul.bf16.gmra.mxu0 %v174
    %v327 = vpop.f32.mrf.mxu0
    %v328 = vadd.f32 %v150, %v327
    %v329 = vpop.f32.mrf.mxu0
    %v330 = vadd.f32 %v150, %v329
    %331 = vmatmul.bf16.gmra.mxu0 %v175
    %v332 = vpop.f32.mrf.mxu0
    %v333 = vadd.f32 %v150, %v332
    %v334 = vpop.f32.mrf.mxu0
    %v335 = vadd.f32 %v150, %v334
    %336 = vdwg.mxu0
    %337 = vmatpush.bf16.msra.mxu0 %v282
    %338 = vmatpush.bf16.msra.mxu0 %v279
    %339 = vmatpush.bf16.msra.mxu0 %v276
    %340 = vmatpush.bf16.msra.mxu0 %v273
    %341 = vmatpush.bf16.msra.mxu0 %v270
    %342 = vmatpush.bf16.msra.mxu0 %v267
    %343 = vmatpush.bf16.msra.mxu0 %v264
    %344 = vmatpush.bf16.msra.mxu0 %v261
    %345 = vmatmul.bf16.gmra.mxu0 %v172
    %v346 = vpop.f32.mrf.mxu0
    %v347 = vadd.f32 %v151, %v346
    %v348 = vpop.f32.mrf.mxu0
    %v349 = vadd.f32 %v151, %v348
    %350 = vmatmul.bf16.gmra.mxu0 %v173
    %v351 = vpop.f32.mrf.mxu0
    %v352 = vadd.f32 %v151, %v351
    %v353 = vpop.f32.mrf.mxu0
    %v354 = vadd.f32 %v151, %v353
    %355 = vmatmul.bf16.gmra.mxu0 %v174
    %v356 = vpop.f32.mrf.mxu0
    %v357 = vadd.f32 %v151, %v356
    %v358 = vpop.f32.mrf.mxu0
    %v359 = vadd.f32 %v151, %v358
    %360 = vmatmul.bf16.gmra.mxu0 %v175
    %v361 = vpop.f32.mrf.mxu0
    %v362 = vadd.f32 %v151, %v361
    %v363 = vpop.f32.mrf.mxu0
    %v364 = vadd.f32 %v151, %v363
    %365 = vdwg.mxu0
    %366 = vmatpush.bf16.msra.mxu0 %v283
    %367 = vmatpush.bf16.msra.mxu0 %v280
    %368 = vmatpush.bf16.msra.mxu0 %v277
    %369 = vmatpush.bf16.msra.mxu0 %v274
    %370 = vmatpush.bf16.msra.mxu0 %v271
    %371 = vmatpush.bf16.msra.mxu0 %v268
    %372 = vmatpush.bf16.msra.mxu0 %v265
    %373 = vmatpush.bf16.msra.mxu0 %v262
    %374 = vmatmul.bf16.gmra.mxu0 %v172
    %v375 = vpop.f32.mrf.mxu0
    %v376 = vadd.f32 %v152, %v375
    %v377 = vpop.f32.mrf.mxu0
    %v378 = vadd.f32 %v152, %v377
    %379 = vmatmul.bf16.gmra.mxu0 %v173
    %v380 = vpop.f32.mrf.mxu0
    %v381 = vadd.f32 %v152, %v380
    %v382 = vpop.f32.mrf.mxu0
    %v383 = vadd.f32 %v152, %v382
    %384 = vmatmul.bf16.gmra.mxu0 %v174
    %v385 = vpop.f32.mrf.mxu0
    %v386 = vadd.f32 %v152, %v385
    %v387 = vpop.f32.mrf.mxu0
    %v388 = vadd.f32 %v152, %v387
    %389 = vmatmul.bf16.gmra.mxu0 %v175
    %v390 = vpop.f32.mrf.mxu0
    %v391 = vadd.f32 %v152, %v390
    %v392 = vpop.f32.mrf.mxu0
    %v393 = vadd.f32 %v152, %v392
    %394 = vdwg.mxu0
    %s395 = smul.u32 0, 3
    %s396 = smul.addr %s395, 8
    %s397 = scalar_lea.vmem [#allocation3], %s396
    %398 = vst [vmem:[%s397] sm:$0xff] %v318
    %399 = vst [vmem:[%s397 + $0x8] sm:$0xff] %v347
    %400 = vst [vmem:[%s397 + $0x10] sm:$0xff] %v376
    %401 = vst [vmem:[%s397 + $0x18] sm:$0xff] %v320
    %402 = vst [vmem:[%s397 + $0x20] sm:$0xff] %v349
    %403 = vst [vmem:[%s397 + $0x28] sm:$0xff] %v378
    %404 = vst [vmem:[%s397 + $0x30] sm:$0xff] %v323
    %405 = vst [vmem:[%s397 + $0x38] sm:$0xff] %v352
    %406 = vst [vmem:[%s397 + $0x40] sm:$0xff] %v381
    %407 = vst [vmem:[%s397 + $0x48] sm:$0xff] %v325
    %408 = vst [vmem:[%s397 + $0x50] sm:$0xff] %v354
    %409 = vst [vmem:[%s397 + $0x58] sm:$0xff] %v383
    %410 = vst [vmem:[%s397 + $0x60] sm:$0xff] %v328
    %411 = vst [vmem:[%s397 + $0x68] sm:$0xff] %v357
    %412 = vst [vmem:[%s397 + $0x70] sm:$0xff] %v386
    %413 = vst [vmem:[%s397 + $0x78] sm:$0xff] %v330
    %414 = vst [vmem:[%s397 + $0x80] sm:$0xff] %v359
    %415 = vst [vmem:[%s397 + $0x88] sm:$0xff] %v388
    %416 = vst [vmem:[%s397 + $0x90] sm:$0xff] %v333
    %417 = vst [vmem:[%s397 + $0x98] sm:$0xff] %v362
    %418 = vst [vmem:[%s397 + $0xa0] sm:$0xff] %v391
    %419 = vst [vmem:[%s397 + $0xa8] sm:$0xff] %v335
    %420 = vst [vmem:[%s397 + $0xb0] sm:$0xff] %v364
    %421 = vst [vmem:[%s397 + $0xb8] sm:$0xff] %v393
    %v422 = vld [vmem:[#allocation10] sm:$0xff]
    %v423 = vld [vmem:[#allocation10 + $0x8] sm:$0xff]
    %v424 = vld [vmem:[#allocation10 + $0x10] sm:$0xff]
    %v425 = vld [vmem:[#allocation10 + $0x18] sm:$0xff]
    %v426 = vld [vmem:[#allocation10 + $0x20] sm:$0xff]
    %v427 = vld [vmem:[#allocation10 + $0x28] sm:$0xff]
    %v428 = vld [vmem:[#allocation10 + $0x30] sm:$0xff]
    %v429 = vld [vmem:[#allocation10 + $0x38] sm:$0xff]
    %v430 = vld [vmem:[#allocation10 + $0x40] sm:$0xff]
    %v431 = vld [vmem:[#allocation10 + $0x48] sm:$0xff]
    %v432 = vld [vmem:[#allocation10 + $0x50] sm:$0xff]
    %v433 = vld [vmem:[#allocation10 + $0x58] sm:$0xff]
    %v434 = vld [vmem:[#allocation10 + $0x60] sm:$0xff]
    %v435 = vld [vmem:[#allocation10 + $0x68] sm:$0xff]
    %v436 = vld [vmem:[#allocation10 + $0x70] sm:$0xff]
    %v437 = vld [vmem:[#allocation10 + $0x78] sm:$0xff]
    %v438 = vld [vmem:[#allocation10 + $0x80] sm:$0xff]
    %v439 = vld [vmem:[#allocation10 + $0x88] sm:$0xff]
    %v440 = vld [vmem:[#allocation10 + $0x90] sm:$0xff]
    %v441 = vld [vmem:[#allocation10 + $0x98] sm:$0xff]
    %v442 = vld [vmem:[#allocation10 + $0xa0] sm:$0xff]
    %v443 = vld [vmem:[#allocation10 + $0xa8] sm:$0xff]
    %v444 = vld [vmem:[#allocation10 + $0xb0] sm:$0xff]
    %v445 = vld [vmem:[#allocation10 + $0xb8] sm:$0xff]
    %v446 = vld [vmem:[#allocation10 + $0xc0] sm:$0xff]
    %v447 = vld [vmem:[#allocation10 + $0xc8] sm:$0xff]
    %v448 = vld [vmem:[#allocation10 + $0xd0] sm:$0xff]
    %v449 = vld [vmem:[#allocation10 + $0xd8] sm:$0xff]
    %v450 = vld [vmem:[#allocation10 + $0xe0] sm:$0xff]
    %v451 = vld [vmem:[#allocation10 + $0xe8] sm:$0xff]
    %v452 = vld [vmem:[#allocation10 + $0xf0] sm:$0xff]
    %v453 = vld [vmem:[#allocation10 + $0xf8] sm:$0xff]
    %v454 = vld [vmem:[#allocation10 + $0x100] sm:$0xff]
    %v455 = vld [vmem:[#allocation10 + $0x108] sm:$0xff]
    %v456 = vld [vmem:[#allocation10 + $0x110] sm:$0xff]
    %v457 = vld [vmem:[#allocation10 + $0x118] sm:$0xff]
    %v458 = vld [vmem:[#allocation10 + $0x120] sm:$0xff]
    %v459 = vld [vmem:[#allocation10 + $0x128] sm:$0xff]
    %v460 = vld [vmem:[#allocation10 + $0x130] sm:$0xff]
    %v461 = vld [vmem:[#allocation10 + $0x138] sm:$0xff]
    %v462 = vld [vmem:[#allocation10 + $0x140] sm:$0xff]
    %v463 = vld [vmem:[#allocation10 + $0x148] sm:$0xff]
    %v464 = vld [vmem:[#allocation10 + $0x150] sm:$0xff]
    %v465 = vld [vmem:[#allocation10 + $0x158] sm:$0xff]
    %v466 = vld [vmem:[#allocation10 + $0x160] sm:$0xff]
    %v467 = vld [vmem:[#allocation10 + $0x168] sm:$0xff]
    %v468 = vld [vmem:[#allocation10 + $0x170] sm:$0xff]
    %v469 = vld [vmem:[#allocation10 + $0x178] sm:$0xff]
    %v470 = vld [vmem:[%s4] sm:$0x1]
    %v472 = vperm.slane %v470, 0
    %v474 = vld [vmem:[#allocation2] sm:$0xff]
    %s475 = smul.u32 0, 3
    %s476 = smul.addr %s475, 8
    %s477 = scalar_lea.vmem [#allocation3], %s476
    %v478 = vld [vmem:[%s477] sm:$0xff]
    %v479 = vld [vmem:[%s477 + $0x8] sm:$0xff]
    %v480 = vld [vmem:[%s477 + $0x10] sm:$0xff]
    %481 = vmatpush.msra.mxu0 %v467
    %482 = vmatpush.msra.mxu0 %v464
    %483 = vmatpush.msra.mxu0 %v461
    %484 = vmatpush.msra.mxu0 %v458
    %485 = vmatpush.msra.mxu0 %v455
    %486 = vmatpush.msra.mxu0 %v452
    %487 = vmatpush.msra.mxu0 %v449
    %488 = vmatpush.msra.mxu0 %v446
    %489 = vmatpush.msra.mxu0 %v443
    %490 = vmatpush.msra.mxu0 %v440
    %491 = vmatpush.msra.mxu0 %v437
    %492 = vmatpush.msra.mxu0 %v434
    %493 = vmatpush.msra.mxu0 %v431
    %494 = vmatpush.msra.mxu0 %v428
    %495 = vmatpush.msra.mxu0 %v425
    %496 = vmatpush.msra.mxu0 %v422
    %497 = vmatmul.f32.gmra.mxu0 %v474
    %v498 = vpop.f32.mrf.mxu0
    %v499 = vadd.f32 0.0, %v498
    %500 = vdwg.mxu0
    %501 = vmatpush.msra.mxu0 %v468
    %502 = vmatpush.msra.mxu0 %v465
    %503 = vmatpush.msra.mxu0 %v462
    %504 = vmatpush.msra.mxu0 %v459
    %505 = vmatpush.msra.mxu0 %v456
    %506 = vmatpush.msra.mxu0 %v453
    %507 = vmatpush.msra.mxu0 %v450
    %508 = vmatpush.msra.mxu0 %v447
    %509 = vmatpush.msra.mxu0 %v444
    %510 = vmatpush.msra.mxu0 %v441
    %511 = vmatpush.msra.mxu0 %v438
    %512 = vmatpush.msra.mxu0 %v435
    %513 = vmatpush.msra.mxu0 %v432
    %514 = vmatpush.msra.mxu0 %v429
    %515 = vmatpush.msra.mxu0 %v426
    %516 = vmatpush.msra.mxu0 %v423
    %517 = vmatmul.f32.gmra.mxu0 %v474
    %v518 = vpop.f32.mrf.mxu0
    %v519 = vadd.f32 0.0, %v518
    %520 = vdwg.mxu0
    %521 = vmatpush.msra.mxu0 %v469
    %522 = vmatpush.msra.mxu0 %v466
    %523 = vmatpush.msra.mxu0 %v463
    %524 = vmatpush.msra.mxu0 %v460
    %525 = vmatpush.msra.mxu0 %v457
    %526 = vmatpush.msra.mxu0 %v454
    %527 = vmatpush.msra.mxu0 %v451
    %528 = vmatpush.msra.mxu0 %v448
    %529 = vmatpush.msra.mxu0 %v445
    %530 = vmatpush.msra.mxu0 %v442
    %531 = vmatpush.msra.mxu0 %v439
    %532 = vmatpush.msra.mxu0 %v436
    %533 = vmatpush.msra.mxu0 %v433
    %534 = vmatpush.msra.mxu0 %v430
    %535 = vmatpush.msra.mxu0 %v427
    %536 = vmatpush.msra.mxu0 %v424
    %537 = vmatmul.f32.gmra.mxu0 %v474
    %v538 = vpop.f32.mrf.mxu0
    %v539 = vadd.f32 0.0, %v538
    %540 = vdwg.mxu0
    %v541 = vadd.f32 %v478, %v499
    %v542 = vxor.u32 %v541, 2147483648
    %v543 = vmul.f32 %v542, 1.442695
    %v544 = vpow.pop %v543
    %v545 = vadd.f32 %v544, 1.0
    %v546 = vrcp.pop %v545
    %v547 = vmul.f32 %v545, %v546
    %v548 = vsub.f32 1.0, %v547
    %v549 = vmul.f32 %v546, %v548
    %v550 = vadd.f32 %v546, %v549
    %vm551 = vweird.f32 %v545
    %vm552 = vweird.f32 %v546
    %vm553 = vmor %vm551, %vm552
    %v554 = vsel %vm553, %v546, %v550
    %v555 = vand.u32 2147483647, %v545
    %vm556 = vcmp.eq.f32.partialorder %v555, 8.507059e+37
    %v557 = vand.u32 %v545, 2147483648
    %v558 = vor.u32 1.1754944e-38, %v557
    %v559 = vsel %vm556, %v558, %v554
    %v560 = vmul.f32 1.0, %v559
    %v561 = vadd.f32 %v479, %v519
    %v562 = vxor.u32 %v561, 2147483648
    %v563 = vmul.f32 %v562, 1.442695
    %v564 = vpow.pop %v563
    %v565 = vadd.f32 %v564, 1.0
    %v566 = vrcp.pop %v565
    %v567 = vmul.f32 %v565, %v566
    %v568 = vsub.f32 1.0, %v567
    %v569 = vmul.f32 %v566, %v568
    %v570 = vadd.f32 %v566, %v569
    %vm571 = vweird.f32 %v565
    %vm572 = vweird.f32 %v566
    %vm573 = vmor %vm571, %vm572
    %v574 = vsel %vm573, %v566, %v570
    %v575 = vand.u32 2147483647, %v565
    %vm576 = vcmp.eq.f32.partialorder %v575, 8.507059e+37
    %v577 = vand.u32 %v565, 2147483648
    %v578 = vor.u32 1.1754944e-38, %v577
    %v579 = vsel %vm576, %v578, %v574
    %v580 = vmul.f32 1.0, %v579
    %v581 = vadd.f32 %v539, %v472
    %v582 = vmul.f32 %v560, %v581
    %v583 = vadd.f32 %v480, %v582
    %v584 = vtanh.pop %v583
    %v585 = vsub.f32 1.0, %v580
    %v586 = vmul.f32 %v585, %v584
    %v587 = vmul.f32 %v580, %v474
    %v588 = vadd.f32 %v586, %v587
    %s589 = smul.u32 1, 3
    %s590 = smul.addr %s589, 8
    %s591 = scalar_lea.vmem [#allocation3], %s590
    %v592 = vld [vmem:[%s591] sm:$0xff]
    %v593 = vld [vmem:[%s591 + $0x8] sm:$0xff]
    %v594 = vld [vmem:[%s591 + $0x10] sm:$0xff]
    %595 = vmatpush.msra.mxu0 %v467
    %596 = vmatpush.msra.mxu0 %v464
    %597 = vmatpush.msra.mxu0 %v461
    %598 = vmatpush.msra.mxu0 %v458
    %599 = vmatpush.msra.mxu0 %v455
    %600 = vmatpush.msra.mxu0 %v452
    %601 = vmatpush.msra.mxu0 %v449
    %602 = vmatpush.msra.mxu0 %v446
    %603 = vmatpush.msra.mxu0 %v443
    %604 = vmatpush.msra.mxu0 %v440
    %605 = vmatpush.msra.mxu0 %v437
    %606 = vmatpush.msra.mxu0 %v434
    %607 = vmatpush.msra.mxu0 %v431
    %608 = vmatpush.msra.mxu0 %v428
    %609 = vmatpush.msra.mxu0 %v425
    %610 = vmatpush.msra.mxu0 %v422
    %611 = vmatmul.f32.gmra.mxu0 %v588
    %v612 = vpop.f32.mrf.mxu0
    %v613 = vadd.f32 0.0, %v612
    %614 = vdwg.mxu0
    %615 = vmatpush.msra.mxu0 %v468
    %616 = vmatpush.msra.mxu0 %v465
    %617 = vmatpush.msra.mxu0 %v462
    %618 = vmatpush.msra.mxu0 %v459
    %619 = vmatpush.msra.mxu0 %v456
    %620 = vmatpush.msra.mxu0 %v453
    %621 = vmatpush.msra.mxu0 %v450
    %622 = vmatpush.msra.mxu0 %v447
    %623 = vmatpush.msra.mxu0 %v444
    %624 = vmatpush.msra.mxu0 %v441
    %625 = vmatpush.msra.mxu0 %v438
    %626 = vmatpush.msra.mxu0 %v435
    %627 = vmatpush.msra.mxu0 %v432
    %628 = vmatpush.msra.mxu0 %v429
    %629 = vmatpush.msra.mxu0 %v426
    %630 = vmatpush.msra.mxu0 %v423
    %631 = vmatmul.f32.gmra.mxu0 %v588
    %v632 = vpop.f32.mrf.mxu0
    %v633 = vadd.f32 0.0, %v632
    %634 = vdwg.mxu0
    %635 = vmatpush.msra.mxu0 %v469
    %636 = vmatpush.msra.mxu0 %v466
    %637 = vmatpush.msra.mxu0 %v463
    %638 = vmatpush.msra.mxu0 %v460
    %639 = vmatpush.msra.mxu0 %v457
    %640 = vmatpush.msra.mxu0 %v454
    %641 = vmatpush.msra.mxu0 %v451
    %642 = vmatpush.msra.mxu0 %v448
    %643 = vmatpush.msra.mxu0 %v445
    %644 = vmatpush.msra.mxu0 %v442
    %645 = vmatpush.msra.mxu0 %v439
    %646 = vmatpush.msra.mxu0 %v436
    %647 = vmatpush.msra.mxu0 %v433
    %648 = vmatpush.msra.mxu0 %v430
    %649 = vmatpush.msra.mxu0 %v427
    %650 = vmatpush.msra.mxu0 %v424
    %651 = vmatmul.f32.gmra.mxu0 %v588
    %v652 = vpop.f32.mrf.mxu0
    %v653 = vadd.f32 0.0, %v652
    %654 = vdwg.mxu0
    %v655 = vadd.f32 %v592, %v613
    %v656 = vxor.u32 %v655, 2147483648
    %v657 = vmul.f32 %v656, 1.442695
    %v658 = vpow.pop %v657
    %v659 = vadd.f32 %v658, 1.0
    %v660 = vrcp.pop %v659
    %v661 = vmul.f32 %v659, %v660
    %v662 = vsub.f32 1.0, %v661
    %v663 = vmul.f32 %v660, %v662
    %v664 = vadd.f32 %v660, %v663
    %vm665 = vweird.f32 %v659
    %vm666 = vweird.f32 %v660
    %vm667 = vmor %vm665, %vm666
    %v668 = vsel %vm667, %v660, %v664
    %v669 = vand.u32 2147483647, %v659
    %vm670 = vcmp.eq.f32.partialorder %v669, 8.507059e+37
    %v671 = vand.u32 %v659, 2147483648
    %v672 = vor.u32 1.1754944e-38, %v671
    %v673 = vsel %vm670, %v672, %v668
    %v674 = vmul.f32 1.0, %v673
    %v675 = vadd.f32 %v593, %v633
    %v676 = vxor.u32 %v675, 2147483648
    %v677 = vmul.f32 %v676, 1.442695
    %v678 = vpow.pop %v677
    %v679 = vadd.f32 %v678, 1.0
    %v680 = vrcp.pop %v679
    %v681 = vmul.f32 %v679, %v680
    %v682 = vsub.f32 1.0, %v681
    %v683 = vmul.f32 %v680, %v682
    %v684 = vadd.f32 %v680, %v683
    %vm685 = vweird.f32 %v679
    %vm686 = vweird.f32 %v680
    %vm687 = vmor %vm685, %vm686
    %v688 = vsel %vm687, %v680, %v684
    %v689 = vand.u32 2147483647, %v679
    %vm690 = vcmp.eq.f32.partialorder %v689, 8.507059e+37
    %v691 = vand.u32 %v679, 2147483648
    %v692 = vor.u32 1.1754944e-38, %v691
    %v693 = vsel %vm690, %v692, %v688
    %v694 = vmul.f32 1.0, %v693
    %v695 = vadd.f32 %v653, %v472
    %v696 = vmul.f32 %v674, %v695
    %v697 = vadd.f32 %v594, %v696
    %v698 = vtanh.pop %v697
    %v699 = vsub.f32 1.0, %v694
    %v700 = vmul.f32 %v699, %v698
    %v701 = vmul.f32 %v694, %v588
    %v702 = vadd.f32 %v700, %v701
    %s703 = smul.u32 2, 3
    %s704 = smul.addr %s703, 8
    %s705 = scalar_lea.vmem [#allocation3], %s704
    %v706 = vld [vmem:[%s705] sm:$0xff]
    %v707 = vld [vmem:[%s705 + $0x8] sm:$0xff]
    %v708 = vld [vmem:[%s705 + $0x10] sm:$0xff]
    %709 = vmatpush.msra.mxu0 %v467
    %710 = vmatpush.msra.mxu0 %v464
    %711 = vmatpush.msra.mxu0 %v461
    %712 = vmatpush.msra.mxu0 %v458
    %713 = vmatpush.msra.mxu0 %v455
    %714 = vmatpush.msra.mxu0 %v452
    %715 = vmatpush.msra.mxu0 %v449
    %716 = vmatpush.msra.mxu0 %v446
    %717 = vmatpush.msra.mxu0 %v443
    %718 = vmatpush.msra.mxu0 %v440
    %719 = vmatpush.msra.mxu0 %v437
    %720 = vmatpush.msra.mxu0 %v434
    %721 = vmatpush.msra.mxu0 %v431
    %722 = vmatpush.msra.mxu0 %v428
    %723 = vmatpush.msra.mxu0 %v425
    %724 = vmatpush.msra.mxu0 %v422
    %725 = vmatmul.f32.gmra.mxu0 %v702
    %v726 = vpop.f32.mrf.mxu0
    %v727 = vadd.f32 0.0, %v726
    %728 = vdwg.mxu0
    %729 = vmatpush.msra.mxu0 %v468
    %730 = vmatpush.msra.mxu0 %v465
    %731 = vmatpush.msra.mxu0 %v462
    %732 = vmatpush.msra.mxu0 %v459
    %733 = vmatpush.msra.mxu0 %v456
    %734 = vmatpush.msra.mxu0 %v453
    %735 = vmatpush.msra.mxu0 %v450
    %736 = vmatpush.msra.mxu0 %v447
    %737 = vmatpush.msra.mxu0 %v444
    %738 = vmatpush.msra.mxu0 %v441
    %739 = vmatpush.msra.mxu0 %v438
    %740 = vmatpush.msra.mxu0 %v435
    %741 = vmatpush.msra.mxu0 %v432
    %742 = vmatpush.msra.mxu0 %v429
    %743 = vmatpush.msra.mxu0 %v426
    %744 = vmatpush.msra.mxu0 %v423
    %745 = vmatmul.f32.gmra.mxu0 %v702
    %v746 = vpop.f32.mrf.mxu0
    %v747 = vadd.f32 0.0, %v746
    %748 = vdwg.mxu0
    %749 = vmatpush.msra.mxu0 %v469
    %750 = vmatpush.msra.mxu0 %v466
    %751 = vmatpush.msra.mxu0 %v463
    %752 = vmatpush.msra.mxu0 %v460
    %753 = vmatpush.msra.mxu0 %v457
    %754 = vmatpush.msra.mxu0 %v454
    %755 = vmatpush.msra.mxu0 %v451
    %756 = vmatpush.msra.mxu0 %v448
    %757 = vmatpush.msra.mxu0 %v445
    %758 = vmatpush.msra.mxu0 %v442
    %759 = vmatpush.msra.mxu0 %v439
    %760 = vmatpush.msra.mxu0 %v436
    %761 = vmatpush.msra.mxu0 %v433
    %762 = vmatpush.msra.mxu0 %v430
    %763 = vmatpush.msra.mxu0 %v427
    %764 = vmatpush.msra.mxu0 %v424
    %765 = vmatmul.f32.gmra.mxu0 %v702
    %v766 = vpop.f32.mrf.mxu0
    %v767 = vadd.f32 0.0, %v766
    %768 = vdwg.mxu0
    %v769 = vadd.f32 %v706, %v727
    %v770 = vxor.u32 %v769, 2147483648
    %v771 = vmul.f32 %v770, 1.442695
    %v772 = vpow.pop %v771
    %v773 = vadd.f32 %v772, 1.0
    %v774 = vrcp.pop %v773
    %v775 = vmul.f32 %v773, %v774
    %v776 = vsub.f32 1.0, %v775
    %v777 = vmul.f32 %v774, %v776
    %v778 = vadd.f32 %v774, %v777
    %vm779 = vweird.f32 %v773
    %vm780 = vweird.f32 %v774
    %vm781 = vmor %vm779, %vm780
    %v782 = vsel %vm781, %v774, %v778
    %v783 = vand.u32 2147483647, %v773
    %vm784 = vcmp.eq.f32.partialorder %v783, 8.507059e+37
    %v785 = vand.u32 %v773, 2147483648
    %v786 = vor.u32 1.1754944e-38, %v785
    %v787 = vsel %vm784, %v786, %v782
    %v788 = vmul.f32 1.0, %v787
    %v789 = vadd.f32 %v707, %v747
    %v790 = vxor.u32 %v789, 2147483648
    %v791 = vmul.f32 %v790, 1.442695
    %v792 = vpow.pop %v791
    %v793 = vadd.f32 %v792, 1.0
    %v794 = vrcp.pop %v793
    %v795 = vmul.f32 %v793, %v794
    %v796 = vsub.f32 1.0, %v795
    %v797 = vmul.f32 %v794, %v796
    %v798 = vadd.f32 %v794, %v797
    %vm799 = vweird.f32 %v793
    %vm800 = vweird.f32 %v794
    %vm801 = vmor %vm799, %vm800
    %v802 = vsel %vm801, %v794, %v798
    %v803 = vand.u32 2147483647, %v793
    %vm804 = vcmp.eq.f32.partialorder %v803, 8.507059e+37
    %v805 = vand.u32 %v793, 2147483648
    %v806 = vor.u32 1.1754944e-38, %v805
    %v807 = vsel %vm804, %v806, %v802
    %v808 = vmul.f32 1.0, %v807
    %v809 = vadd.f32 %v767, %v472
    %v810 = vmul.f32 %v788, %v809
    %v811 = vadd.f32 %v708, %v810
    %v812 = vtanh.pop %v811
    %v813 = vsub.f32 1.0, %v808
    %v814 = vmul.f32 %v813, %v812
    %v815 = vmul.f32 %v808, %v702
    %v816 = vadd.f32 %v814, %v815
    %s817 = smul.u32 3, 3
    %s818 = smul.addr %s817, 8
    %s819 = scalar_lea.vmem [#allocation3], %s818
    %v820 = vld [vmem:[%s819] sm:$0xff]
    %v821 = vld [vmem:[%s819 + $0x8] sm:$0xff]
    %v822 = vld [vmem:[%s819 + $0x10] sm:$0xff]
    %823 = vmatpush.msra.mxu0 %v467
    %824 = vmatpush.msra.mxu0 %v464
    %825 = vmatpush.msra.mxu0 %v461
    %826 = vmatpush.msra.mxu0 %v458
    %827 = vmatpush.msra.mxu0 %v455
    %828 = vmatpush.msra.mxu0 %v452
    %829 = vmatpush.msra.mxu0 %v449
    %830 = vmatpush.msra.mxu0 %v446
    %831 = vmatpush.msra.mxu0 %v443
    %832 = vmatpush.msra.mxu0 %v440
    %833 = vmatpush.msra.mxu0 %v437
    %834 = vmatpush.msra.mxu0 %v434
    %835 = vmatpush.msra.mxu0 %v431
    %836 = vmatpush.msra.mxu0 %v428
    %837 = vmatpush.msra.mxu0 %v425
    %838 = vmatpush.msra.mxu0 %v422
    %839 = vmatmul.f32.gmra.mxu0 %v816
    %v840 = vpop.f32.mrf.mxu0
    %v841 = vadd.f32 0.0, %v840
    %842 = vdwg.mxu0
    %843 = vmatpush.msra.mxu0 %v468
    %844 = vmatpush.msra.mxu0 %v465
    %845 = vmatpush.msra.mxu0 %v462
    %846 = vmatpush.msra.mxu0 %v459
    %847 = vmatpush.msra.mxu0 %v456
    %848 = vmatpush.msra.mxu0 %v453
    %849 = vmatpush.msra.mxu0 %v450
    %850 = vmatpush.msra.mxu0 %v447
    %851 = vmatpush.msra.mxu0 %v444
    %852 = vmatpush.msra.mxu0 %v441
    %853 = vmatpush.msra.mxu0 %v438
    %854 = vmatpush.msra.mxu0 %v435
    %855 = vmatpush.msra.mxu0 %v432
    %856 = vmatpush.msra.mxu0 %v429
    %857 = vmatpush.msra.mxu0 %v426
    %858 = vmatpush.msra.mxu0 %v423
    %859 = vmatmul.f32.gmra.mxu0 %v816
    %v860 = vpop.f32.mrf.mxu0
    %v861 = vadd.f32 0.0, %v860
    %862 = vdwg.mxu0
    %863 = vmatpush.msra.mxu0 %v469
    %864 = vmatpush.msra.mxu0 %v466
    %865 = vmatpush.msra.mxu0 %v463
    %866 = vmatpush.msra.mxu0 %v460
    %867 = vmatpush.msra.mxu0 %v457
    %868 = vmatpush.msra.mxu0 %v454
    %869 = vmatpush.msra.mxu0 %v451
    %870 = vmatpush.msra.mxu0 %v448
    %871 = vmatpush.msra.mxu0 %v445
    %872 = vmatpush.msra.mxu0 %v442
    %873 = vmatpush.msra.mxu0 %v439
    %874 = vmatpush.msra.mxu0 %v436
    %875 = vmatpush.msra.mxu0 %v433
    %876 = vmatpush.msra.mxu0 %v430
    %877 = vmatpush.msra.mxu0 %v427
    %878 = vmatpush.msra.mxu0 %v424
    %879 = vmatmul.f32.gmra.mxu0 %v816
    %v880 = vpop.f32.mrf.mxu0
    %v881 = vadd.f32 0.0, %v880
    %882 = vdwg.mxu0
    %v883 = vadd.f32 %v820, %v841
    %v884 = vxor.u32 %v883, 2147483648
    %v885 = vmul.f32 %v884, 1.442695
    %v886 = vpow.pop %v885
    %v887 = vadd.f32 %v886, 1.0
    %v888 = vrcp.pop %v887
    %v889 = vmul.f32 %v887, %v888
    %v890 = vsub.f32 1.0, %v889
    %v891 = vmul.f32 %v888, %v890
    %v892 = vadd.f32 %v888, %v891
    %vm893 = vweird.f32 %v887
    %vm894 = vweird.f32 %v888
    %vm895 = vmor %vm893, %vm894
    %v896 = vsel %vm895, %v888, %v892
    %v897 = vand.u32 2147483647, %v887
    %vm898 = vcmp.eq.f32.partialorder %v897, 8.507059e+37
    %v899 = vand.u32 %v887, 2147483648
    %v900 = vor.u32 1.1754944e-38, %v899
    %v901 = vsel %vm898, %v900, %v896
    %v902 = vmul.f32 1.0, %v901
    %v903 = vadd.f32 %v821, %v861
    %v904 = vxor.u32 %v903, 2147483648
    %v905 = vmul.f32 %v904, 1.442695
    %v906 = vpow.pop %v905
    %v907 = vadd.f32 %v906, 1.0
    %v908 = vrcp.pop %v907
    %v909 = vmul.f32 %v907, %v908
    %v910 = vsub.f32 1.0, %v909
    %v911 = vmul.f32 %v908, %v910
    %v912 = vadd.f32 %v908, %v911
    %vm913 = vweird.f32 %v907
    %vm914 = vweird.f32 %v908
    %vm915 = vmor %vm913, %vm914
    %v916 = vsel %vm915, %v908, %v912
    %v917 = vand.u32 2147483647, %v907
    %vm918 = vcmp.eq.f32.partialorder %v917, 8.507059e+37
    %v919 = vand.u32 %v907, 2147483648
    %v920 = vor.u32 1.1754944e-38, %v919
    %v921 = vsel %vm918, %v920, %v916
    %v922 = vmul.f32 1.0, %v921
    %v923 = vadd.f32 %v881, %v472
    %v924 = vmul.f32 %v902, %v923
    %v925 = vadd.f32 %v822, %v924
    %v926 = vtanh.pop %v925
    %v927 = vsub.f32 1.0, %v922
    %v928 = vmul.f32 %v927, %v926
    %v929 = vmul.f32 %v922, %v816
    %v930 = vadd.f32 %v928, %v929
    %s931 = smul.u32 4, 3
    %s932 = smul.addr %s931, 8
    %s933 = scalar_lea.vmem [#allocation3], %s932
    %v934 = vld [vmem:[%s933] sm:$0xff]
    %v935 = vld [vmem:[%s933 + $0x8] sm:$0xff]
    %v936 = vld [vmem:[%s933 + $0x10] sm:$0xff]
    %937 = vmatpush.msra.mxu0 %v467
    %938 = vmatpush.msra.mxu0 %v464
    %939 = vmatpush.msra.mxu0 %v461
    %940 = vmatpush.msra.mxu0 %v458
    %941 = vmatpush.msra.mxu0 %v455
    %942 = vmatpush.msra.mxu0 %v452
    %943 = vmatpush.msra.mxu0 %v449
    %944 = vmatpush.msra.mxu0 %v446
    %945 = vmatpush.msra.mxu0 %v443
    %946 = vmatpush.msra.mxu0 %v440
    %947 = vmatpush.msra.mxu0 %v437
    %948 = vmatpush.msra.mxu0 %v434
    %949 = vmatpush.msra.mxu0 %v431
    %950 = vmatpush.msra.mxu0 %v428
    %951 = vmatpush.msra.mxu0 %v425
    %952 = vmatpush.msra.mxu0 %v422
    %953 = vmatmul.f32.gmra.mxu0 %v930
    %v954 = vpop.f32.mrf.mxu0
    %v955 = vadd.f32 0.0, %v954
    %956 = vdwg.mxu0
    %957 = vmatpush.msra.mxu0 %v468
    %958 = vmatpush.msra.mxu0 %v465
    %959 = vmatpush.msra.mxu0 %v462
    %960 = vmatpush.msra.mxu0 %v459
    %961 = vmatpush.msra.mxu0 %v456
    %962 = vmatpush.msra.mxu0 %v453
    %963 = vmatpush.msra.mxu0 %v450
    %964 = vmatpush.msra.mxu0 %v447
    %965 = vmatpush.msra.mxu0 %v444
    %966 = vmatpush.msra.mxu0 %v441
    %967 = vmatpush.msra.mxu0 %v438
    %968 = vmatpush.msra.mxu0 %v435
    %969 = vmatpush.msra.mxu0 %v432
    %970 = vmatpush.msra.mxu0 %v429
    %971 = vmatpush.msra.mxu0 %v426
    %972 = vmatpush.msra.mxu0 %v423
    %973 = vmatmul.f32.gmra.mxu0 %v930
    %v974 = vpop.f32.mrf.mxu0
    %v975 = vadd.f32 0.0, %v974
    %976 = vdwg.mxu0
    %977 = vmatpush.msra.mxu0 %v469
    %978 = vmatpush.msra.mxu0 %v466
    %979 = vmatpush.msra.mxu0 %v463
    %980 = vmatpush.msra.mxu0 %v460
    %981 = vmatpush.msra.mxu0 %v457
    %982 = vmatpush.msra.mxu0 %v454
    %983 = vmatpush.msra.mxu0 %v451
    %984 = vmatpush.msra.mxu0 %v448
    %985 = vmatpush.msra.mxu0 %v445
    %986 = vmatpush.msra.mxu0 %v442
    %987 = vmatpush.msra.mxu0 %v439
    %988 = vmatpush.msra.mxu0 %v436
    %989 = vmatpush.msra.mxu0 %v433
    %990 = vmatpush.msra.mxu0 %v430
    %991 = vmatpush.msra.mxu0 %v427
    %992 = vmatpush.msra.mxu0 %v424
    %993 = vmatmul.f32.gmra.mxu0 %v930
    %v994 = vpop.f32.mrf.mxu0
    %v995 = vadd.f32 0.0, %v994
    %996 = vdwg.mxu0
    %v997 = vadd.f32 %v934, %v955
    %v998 = vxor.u32 %v997, 2147483648
    %v999 = vmul.f32 %v998, 1.442695
    %v1000 = vpow.pop %v999
    %v1001 = vadd.f32 %v1000, 1.0
    %v1002 = vrcp.pop %v1001
    %v1003 = vmul.f32 %v1001, %v1002
    %v1004 = vsub.f32 1.0, %v1003
    %v1005 = vmul.f32 %v1002, %v1004
    %v1006 = vadd.f32 %v1002, %v1005
    %vm1007 = vweird.f32 %v1001
    %vm1008 = vweird.f32 %v1002
    %vm1009 = vmor %vm1007, %vm1008
    %v1010 = vsel %vm1009, %v1002, %v1006
    %v1011 = vand.u32 2147483647, %v1001
    %vm1012 = vcmp.eq.f32.partialorder %v1011, 8.507059e+37
    %v1013 = vand.u32 %v1001, 2147483648
    %v1014 = vor.u32 1.1754944e-38, %v1013
    %v1015 = vsel %vm1012, %v1014, %v1010
    %v1016 = vmul.f32 1.0, %v1015
    %v1017 = vadd.f32 %v935, %v975
    %v1018 = vxor.u32 %v1017, 2147483648
    %v1019 = vmul.f32 %v1018, 1.442695
    %v1020 = vpow.pop %v1019
    %v1021 = vadd.f32 %v1020, 1.0
    %v1022 = vrcp.pop %v1021
    %v1023 = vmul.f32 %v1021, %v1022
    %v1024 = vsub.f32 1.0, %v1023
    %v1025 = vmul.f32 %v1022, %v1024
    %v1026 = vadd.f32 %v1022, %v1025
    %vm1027 = vweird.f32 %v1021
    %vm1028 = vweird.f32 %v1022
    %vm1029 = vmor %vm1027, %vm1028
    %v1030 = vsel %vm1029, %v1022, %v1026
    %v1031 = vand.u32 2147483647, %v1021
    %vm1032 = vcmp.eq.f32.partialorder %v1031, 8.507059e+37
    %v1033 = vand.u32 %v1021, 2147483648
    %v1034 = vor.u32 1.1754944e-38, %v1033
    %v1035 = vsel %vm1032, %v1034, %v1030
    %v1036 = vmul.f32 1.0, %v1035
    %v1037 = vadd.f32 %v995, %v472
    %v1038 = vmul.f32 %v1016, %v1037
    %v1039 = vadd.f32 %v936, %v1038
    %v1040 = vtanh.pop %v1039
    %v1041 = vsub.f32 1.0, %v1036
    %v1042 = vmul.f32 %v1041, %v1040
    %v1043 = vmul.f32 %v1036, %v930
    %v1044 = vadd.f32 %v1042, %v1043
    %s1045 = smul.u32 5, 3
    %s1046 = smul.addr %s1045, 8
    %s1047 = scalar_lea.vmem [#allocation3], %s1046
    %v1048 = vld [vmem:[%s1047] sm:$0xff]
    %v1049 = vld [vmem:[%s1047 + $0x8] sm:$0xff]
    %v1050 = vld [vmem:[%s1047 + $0x10] sm:$0xff]
    %1051 = vmatpush.msra.mxu0 %v467
    %1052 = vmatpush.msra.mxu0 %v464
    %1053 = vmatpush.msra.mxu0 %v461
    %1054 = vmatpush.msra.mxu0 %v458
    %1055 = vmatpush.msra.mxu0 %v455
    %1056 = vmatpush.msra.mxu0 %v452
    %1057 = vmatpush.msra.mxu0 %v449
    %1058 = vmatpush.msra.mxu0 %v446
    %1059 = vmatpush.msra.mxu0 %v443
    %1060 = vmatpush.msra.mxu0 %v440
    %1061 = vmatpush.msra.mxu0 %v437
    %1062 = vmatpush.msra.mxu0 %v434
    %1063 = vmatpush.msra.mxu0 %v431
    %1064 = vmatpush.msra.mxu0 %v428
    %1065 = vmatpush.msra.mxu0 %v425
    %1066 = vmatpush.msra.mxu0 %v422
    %1067 = vmatmul.f32.gmra.mxu0 %v1044
    %v1068 = vpop.f32.mrf.mxu0
    %v1069 = vadd.f32 0.0, %v1068
    %1070 = vdwg.mxu0
    %1071 = vmatpush.msra.mxu0 %v468
    %1072 = vmatpush.msra.mxu0 %v465
    %1073 = vmatpush.msra.mxu0 %v462
    %1074 = vmatpush.msra.mxu0 %v459
    %1075 = vmatpush.msra.mxu0 %v456
    %1076 = vmatpush.msra.mxu0 %v453
    %1077 = vmatpush.msra.mxu0 %v450
    %1078 = vmatpush.msra.mxu0 %v447
    %1079 = vmatpush.msra.mxu0 %v444
    %1080 = vmatpush.msra.mxu0 %v441
    %1081 = vmatpush.msra.mxu0 %v438
    %1082 = vmatpush.msra.mxu0 %v435
    %1083 = vmatpush.msra.mxu0 %v432
    %1084 = vmatpush.msra.mxu0 %v429
    %1085 = vmatpush.msra.mxu0 %v426
    %1086 = vmatpush.msra.mxu0 %v423
    %1087 = vmatmul.f32.gmra.mxu0 %v1044
    %v1088 = vpop.f32.mrf.mxu0
    %v1089 = vadd.f32 0.0, %v1088
    %1090 = vdwg.mxu0
    %1091 = vmatpush.msra.mxu0 %v469
    %1092 = vmatpush.msra.mxu0 %v466
    %1093 = vmatpush.msra.mxu0 %v463
    %1094 = vmatpush.msra.mxu0 %v460
    %1095 = vmatpush.msra.mxu0 %v457
    %1096 = vmatpush.msra.mxu0 %v454
    %1097 = vmatpush.msra.mxu0 %v451
    %1098 = vmatpush.msra.mxu0 %v448
    %1099 = vmatpush.msra.mxu0 %v445
    %1100 = vmatpush.msra.mxu0 %v442
    %1101 = vmatpush.msra.mxu0 %v439
    %1102 = vmatpush.msra.mxu0 %v436
    %1103 = vmatpush.msra.mxu0 %v433
    %1104 = vmatpush.msra.mxu0 %v430
    %1105 = vmatpush.msra.mxu0 %v427
    %1106 = vmatpush.msra.mxu0 %v424
    %1107 = vmatmul.f32.gmra.mxu0 %v1044
    %v1108 = vpop.f32.mrf.mxu0
    %v1109 = vadd.f32 0.0, %v1108
    %1110 = vdwg.mxu0
    %v1111 = vadd.f32 %v1048, %v1069
    %v1112 = vxor.u32 %v1111, 2147483648
    %v1113 = vmul.f32 %v1112, 1.442695
    %v1114 = vpow.pop %v1113
    %v1115 = vadd.f32 %v1114, 1.0
    %v1116 = vrcp.pop %v1115
    %v1117 = vmul.f32 %v1115, %v1116
    %v1118 = vsub.f32 1.0, %v1117
    %v1119 = vmul.f32 %v1116, %v1118
    %v1120 = vadd.f32 %v1116, %v1119
    %vm1121 = vweird.f32 %v1115
    %vm1122 = vweird.f32 %v1116
    %vm1123 = vmor %vm1121, %vm1122
    %v1124 = vsel %vm1123, %v1116, %v1120
    %v1125 = vand.u32 2147483647, %v1115
    %vm1126 = vcmp.eq.f32.partialorder %v1125, 8.507059e+37
    %v1127 = vand.u32 %v1115, 2147483648
    %v1128 = vor.u32 1.1754944e-38, %v1127
    %v1129 = vsel %vm1126, %v1128, %v1124
    %v1130 = vmul.f32 1.0, %v1129
    %v1131 = vadd.f32 %v1049, %v1089
    %v1132 = vxor.u32 %v1131, 2147483648
    %v1133 = vmul.f32 %v1132, 1.442695
    %v1134 = vpow.pop %v1133
    %v1135 = vadd.f32 %v1134, 1.0
    %v1136 = vrcp.pop %v1135
    %v1137 = vmul.f32 %v1135, %v1136
    %v1138 = vsub.f32 1.0, %v1137
    %v1139 = vmul.f32 %v1136, %v1138
    %v1140 = vadd.f32 %v1136, %v1139
    %vm1141 = vweird.f32 %v1135
    %vm1142 = vweird.f32 %v1136
    %vm1143 = vmor %vm1141, %vm1142
    %v1144 = vsel %vm1143, %v1136, %v1140
    %v1145 = vand.u32 2147483647, %v1135
    %vm1146 = vcmp.eq.f32.partialorder %v1145, 8.507059e+37
    %v1147 = vand.u32 %v1135, 2147483648
    %v1148 = vor.u32 1.1754944e-38, %v1147
    %v1149 = vsel %vm1146, %v1148, %v1144
    %v1150 = vmul.f32 1.0, %v1149
    %v1151 = vadd.f32 %v1109, %v472
    %v1152 = vmul.f32 %v1130, %v1151
    %v1153 = vadd.f32 %v1050, %v1152
    %v1154 = vtanh.pop %v1153
    %v1155 = vsub.f32 1.0, %v1150
    %v1156 = vmul.f32 %v1155, %v1154
    %v1157 = vmul.f32 %v1150, %v1044
    %v1158 = vadd.f32 %v1156, %v1157
    %s1159 = smul.u32 6, 3
    %s1160 = smul.addr %s1159, 8
    %s1161 = scalar_lea.vmem [#allocation3], %s1160
    %v1162 = vld [vmem:[%s1161] sm:$0xff]
    %v1163 = vld [vmem:[%s1161 + $0x8] sm:$0xff]
    %v1164 = vld [vmem:[%s1161 + $0x10] sm:$0xff]
    %1165 = vmatpush.msra.mxu0 %v467
    %1166 = vmatpush.msra.mxu0 %v464
    %1167 = vmatpush.msra.mxu0 %v461
    %1168 = vmatpush.msra.mxu0 %v458
    %1169 = vmatpush.msra.mxu0 %v455
    %1170 = vmatpush.msra.mxu0 %v452
    %1171 = vmatpush.msra.mxu0 %v449
    %1172 = vmatpush.msra.mxu0 %v446
    %1173 = vmatpush.msra.mxu0 %v443
    %1174 = vmatpush.msra.mxu0 %v440
    %1175 = vmatpush.msra.mxu0 %v437
    %1176 = vmatpush.msra.mxu0 %v434
    %1177 = vmatpush.msra.mxu0 %v431
    %1178 = vmatpush.msra.mxu0 %v428
    %1179 = vmatpush.msra.mxu0 %v425
    %1180 = vmatpush.msra.mxu0 %v422
    %1181 = vmatmul.f32.gmra.mxu0 %v1158
    %v1182 = vpop.f32.mrf.mxu0
    %v1183 = vadd.f32 0.0, %v1182
    %1184 = vdwg.mxu0
    %1185 = vmatpush.msra.mxu0 %v468
    %1186 = vmatpush.msra.mxu0 %v465
    %1187 = vmatpush.msra.mxu0 %v462
    %1188 = vmatpush.msra.mxu0 %v459
    %1189 = vmatpush.msra.mxu0 %v456
    %1190 = vmatpush.msra.mxu0 %v453
    %1191 = vmatpush.msra.mxu0 %v450
    %1192 = vmatpush.msra.mxu0 %v447
    %1193 = vmatpush.msra.mxu0 %v444
    %1194 = vmatpush.msra.mxu0 %v441
    %1195 = vmatpush.msra.mxu0 %v438
    %1196 = vmatpush.msra.mxu0 %v435
    %1197 = vmatpush.msra.mxu0 %v432
    %1198 = vmatpush.msra.mxu0 %v429
    %1199 = vmatpush.msra.mxu0 %v426
    %1200 = vmatpush.msra.mxu0 %v423
    %1201 = vmatmul.f32.gmra.mxu0 %v1158
    %v1202 = vpop.f32.mrf.mxu0
    %v1203 = vadd.f32 0.0, %v1202
    %1204 = vdwg.mxu0
    %1205 = vmatpush.msra.mxu0 %v469
    %1206 = vmatpush.msra.mxu0 %v466
    %1207 = vmatpush.msra.mxu0 %v463
    %1208 = vmatpush.msra.mxu0 %v460
    %1209 = vmatpush.msra.mxu0 %v457
    %1210 = vmatpush.msra.mxu0 %v454
    %1211 = vmatpush.msra.mxu0 %v451
    %1212 = vmatpush.msra.mxu0 %v448
    %1213 = vmatpush.msra.mxu0 %v445
    %1214 = vmatpush.msra.mxu0 %v442
    %1215 = vmatpush.msra.mxu0 %v439
    %1216 = vmatpush.msra.mxu0 %v436
    %1217 = vmatpush.msra.mxu0 %v433
    %1218 = vmatpush.msra.mxu0 %v430
    %1219 = vmatpush.msra.mxu0 %v427
    %1220 = vmatpush.msra.mxu0 %v424
    %1221 = vmatmul.f32.gmra.mxu0 %v1158
    %v1222 = vpop.f32.mrf.mxu0
    %v1223 = vadd.f32 0.0, %v1222
    %1224 = vdwg.mxu0
    %v1225 = vadd.f32 %v1162, %v1183
    %v1226 = vxor.u32 %v1225, 2147483648
    %v1227 = vmul.f32 %v1226, 1.442695
    %v1228 = vpow.pop %v1227
    %v1229 = vadd.f32 %v1228, 1.0
    %v1230 = vrcp.pop %v1229
    %v1231 = vmul.f32 %v1229, %v1230
    %v1232 = vsub.f32 1.0, %v1231
    %v1233 = vmul.f32 %v1230, %v1232
    %v1234 = vadd.f32 %v1230, %v1233
    %vm1235 = vweird.f32 %v1229
    %vm1236 = vweird.f32 %v1230
    %vm1237 = vmor %vm1235, %vm1236
    %v1238 = vsel %vm1237, %v1230, %v1234
    %v1239 = vand.u32 2147483647, %v1229
    %vm1240 = vcmp.eq.f32.partialorder %v1239, 8.507059e+37
    %v1241 = vand.u32 %v1229, 2147483648
    %v1242 = vor.u32 1.1754944e-38, %v1241
    %v1243 = vsel %vm1240, %v1242, %v1238
    %v1244 = vmul.f32 1.0, %v1243
    %v1245 = vadd.f32 %v1163, %v1203
    %v1246 = vxor.u32 %v1245, 2147483648
    %v1247 = vmul.f32 %v1246, 1.442695
    %v1248 = vpow.pop %v1247
    %v1249 = vadd.f32 %v1248, 1.0
    %v1250 = vrcp.pop %v1249
    %v1251 = vmul.f32 %v1249, %v1250
    %v1252 = vsub.f32 1.0, %v1251
    %v1253 = vmul.f32 %v1250, %v1252
    %v1254 = vadd.f32 %v1250, %v1253
    %vm1255 = vweird.f32 %v1249
    %vm1256 = vweird.f32 %v1250
    %vm1257 = vmor %vm1255, %vm1256
    %v1258 = vsel %vm1257, %v1250, %v1254
    %v1259 = vand.u32 2147483647, %v1249
    %vm1260 = vcmp.eq.f32.partialorder %v1259, 8.507059e+37
    %v1261 = vand.u32 %v1249, 2147483648
    %v1262 = vor.u32 1.1754944e-38, %v1261
    %v1263 = vsel %vm1260, %v1262, %v1258
    %v1264 = vmul.f32 1.0, %v1263
    %v1265 = vadd.f32 %v1223, %v472
    %v1266 = vmul.f32 %v1244, %v1265
    %v1267 = vadd.f32 %v1164, %v1266
    %v1268 = vtanh.pop %v1267
    %v1269 = vsub.f32 1.0, %v1264
    %v1270 = vmul.f32 %v1269, %v1268
    %v1271 = vmul.f32 %v1264, %v1158
    %v1272 = vadd.f32 %v1270, %v1271
    %s1273 = smul.u32 7, 3
    %s1274 = smul.addr %s1273, 8
    %s1275 = scalar_lea.vmem [#allocation3], %s1274
    %v1276 = vld [vmem:[%s1275] sm:$0xff]
    %v1277 = vld [vmem:[%s1275 + $0x8] sm:$0xff]
    %v1278 = vld [vmem:[%s1275 + $0x10] sm:$0xff]
    %1279 = vmatpush.msra.mxu0 %v467
    %1280 = vmatpush.msra.mxu0 %v464
    %1281 = vmatpush.msra.mxu0 %v461
    %1282 = vmatpush.msra.mxu0 %v458
    %1283 = vmatpush.msra.mxu0 %v455
    %1284 = vmatpush.msra.mxu0 %v452
    %1285 = vmatpush.msra.mxu0 %v449
    %1286 = vmatpush.msra.mxu0 %v446
    %1287 = vmatpush.msra.mxu0 %v443
    %1288 = vmatpush.msra.mxu0 %v440
    %1289 = vmatpush.msra.mxu0 %v437
    %1290 = vmatpush.msra.mxu0 %v434
    %1291 = vmatpush.msra.mxu0 %v431
    %1292 = vmatpush.msra.mxu0 %v428
    %1293 = vmatpush.msra.mxu0 %v425
    %1294 = vmatpush.msra.mxu0 %v422
    %1295 = vmatmul.f32.gmra.mxu0 %v1272
    %v1296 = vpop.f32.mrf.mxu0
    %v1297 = vadd.f32 0.0, %v1296
    %1298 = vdwg.mxu0
    %1299 = vmatpush.msra.mxu0 %v468
    %1300 = vmatpush.msra.mxu0 %v465
    %1301 = vmatpush.msra.mxu0 %v462
    %1302 = vmatpush.msra.mxu0 %v459
    %1303 = vmatpush.msra.mxu0 %v456
    %1304 = vmatpush.msra.mxu0 %v453
    %1305 = vmatpush.msra.mxu0 %v450
    %1306 = vmatpush.msra.mxu0 %v447
    %1307 = vmatpush.msra.mxu0 %v444
    %1308 = vmatpush.msra.mxu0 %v441
    %1309 = vmatpush.msra.mxu0 %v438
    %1310 = vmatpush.msra.mxu0 %v435
    %1311 = vmatpush.msra.mxu0 %v432
    %1312 = vmatpush.msra.mxu0 %v429
    %1313 = vmatpush.msra.mxu0 %v426
    %1314 = vmatpush.msra.mxu0 %v423
    %1315 = vmatmul.f32.gmra.mxu0 %v1272
    %v1316 = vpop.f32.mrf.mxu0
    %v1317 = vadd.f32 0.0, %v1316
    %1318 = vdwg.mxu0
    %1319 = vmatpush.msra.mxu0 %v469
    %1320 = vmatpush.msra.mxu0 %v466
    %1321 = vmatpush.msra.mxu0 %v463
    %1322 = vmatpush.msra.mxu0 %v460
    %1323 = vmatpush.msra.mxu0 %v457
    %1324 = vmatpush.msra.mxu0 %v454
    %1325 = vmatpush.msra.mxu0 %v451
    %1326 = vmatpush.msra.mxu0 %v448
    %1327 = vmatpush.msra.mxu0 %v445
    %1328 = vmatpush.msra.mxu0 %v442
    %1329 = vmatpush.msra.mxu0 %v439
    %1330 = vmatpush.msra.mxu0 %v436
    %1331 = vmatpush.msra.mxu0 %v433
    %1332 = vmatpush.msra.mxu0 %v430
    %1333 = vmatpush.msra.mxu0 %v427
    %1334 = vmatpush.msra.mxu0 %v424
    %1335 = vmatmul.f32.gmra.mxu0 %v1272
    %v1336 = vpop.f32.mrf.mxu0
    %v1337 = vadd.f32 0.0, %v1336
    %1338 = vdwg.mxu0
    %v1339 = vadd.f32 %v1276, %v1297
    %v1340 = vxor.u32 %v1339, 2147483648
    %v1341 = vmul.f32 %v1340, 1.442695
    %v1342 = vpow.pop %v1341
    %v1343 = vadd.f32 %v1342, 1.0
    %v1344 = vrcp.pop %v1343
    %v1345 = vmul.f32 %v1343, %v1344
    %v1346 = vsub.f32 1.0, %v1345
    %v1347 = vmul.f32 %v1344, %v1346
    %v1348 = vadd.f32 %v1344, %v1347
    %vm1349 = vweird.f32 %v1343
    %vm1350 = vweird.f32 %v1344
    %vm1351 = vmor %vm1349, %vm1350
    %v1352 = vsel %vm1351, %v1344, %v1348
    %v1353 = vand.u32 2147483647, %v1343
    %vm1354 = vcmp.eq.f32.partialorder %v1353, 8.507059e+37
    %v1355 = vand.u32 %v1343, 2147483648
    %v1356 = vor.u32 1.1754944e-38, %v1355
    %v1357 = vsel %vm1354, %v1356, %v1352
    %v1358 = vmul.f32 1.0, %v1357
    %v1359 = vadd.f32 %v1277, %v1317
    %v1360 = vxor.u32 %v1359, 2147483648
    %v1361 = vmul.f32 %v1360, 1.442695
    %v1362 = vpow.pop %v1361
    %v1363 = vadd.f32 %v1362, 1.0
    %v1364 = vrcp.pop %v1363
    %v1365 = vmul.f32 %v1363, %v1364
    %v1366 = vsub.f32 1.0, %v1365
    %v1367 = vmul.f32 %v1364, %v1366
    %v1368 = vadd.f32 %v1364, %v1367
    %vm1369 = vweird.f32 %v1363
    %vm1370 = vweird.f32 %v1364
    %vm1371 = vmor %vm1369, %vm1370
    %v1372 = vsel %vm1371, %v1364, %v1368
    %v1373 = vand.u32 2147483647, %v1363
    %vm1374 = vcmp.eq.f32.partialorder %v1373, 8.507059e+37
    %v1375 = vand.u32 %v1363, 2147483648
    %v1376 = vor.u32 1.1754944e-38, %v1375
    %v1377 = vsel %vm1374, %v1376, %v1372
    %v1378 = vmul.f32 1.0, %v1377
    %v1379 = vadd.f32 %v1337, %v472
    %v1380 = vmul.f32 %v1358, %v1379
    %v1381 = vadd.f32 %v1278, %v1380
    %v1382 = vtanh.pop %v1381
    %v1383 = vsub.f32 1.0, %v1378
    %v1384 = vmul.f32 %v1383, %v1382
    %v1385 = vmul.f32 %v1378, %v1272
    %v1386 = vadd.f32 %v1384, %v1385
    %1387 = vst [vmem:[#allocation2] sm:$0xff] %v1386
    // Predicated region
    $region54: #{tpu_custom_call.1} parent=1 // pred_check
      %p1388 = pneg %p103
    $region55: #{tpu_custom_call.1} parent=1 // pred_check_branch
      %1390 = sbr.rel (%p1388) target = $region57
    $region56: #{tpu_custom_call.1} parent=1 // pred_region
      %v1391 = vld [vmem:[#allocation12] sm:$0xff]
      %v1392 = vld [vmem:[#allocation12 + $0x8] sm:$0xff]
      %v1393 = vld [vmem:[#allocation12 + $0x10] sm:$0xff]
      %v1394 = vld [vmem:[#allocation12 + $0x18] sm:$0xff]
      %v1395 = vld [vmem:[#allocation12 + $0x20] sm:$0xff]
      %v1396 = vld [vmem:[#allocation12 + $0x28] sm:$0xff]
      %v1397 = vld [vmem:[#allocation12 + $0x30] sm:$0xff]
      %v1398 = vld [vmem:[#allocation12 + $0x38] sm:$0xff]
      %v1399 = vld [vmem:[#allocation12 + $0x40] sm:$0xff]
      %v1400 = vld [vmem:[#allocation12 + $0x48] sm:$0xff]
      %v1401 = vld [vmem:[#allocation12 + $0x50] sm:$0xff]
      %v1402 = vld [vmem:[#allocation12 + $0x58] sm:$0xff]
      %v1403 = vld [vmem:[#allocation12 + $0x60] sm:$0xff]
      %v1404 = vld [vmem:[#allocation12 + $0x68] sm:$0xff]
      %v1405 = vld [vmem:[#allocation12 + $0x70] sm:$0xff]
      %v1406 = vld [vmem:[#allocation12 + $0x78] sm:$0xff]
      %v1407 = vld [vmem:[%s6] sm:$0x1]
      %v1409 = vperm.slane %v1407, 0
      %1411 = vmatpush.msra.mxu0 %v1406
      %1412 = vmatpush.msra.mxu0 %v1405
      %1413 = vmatpush.msra.mxu0 %v1404
      %1414 = vmatpush.msra.mxu0 %v1403
      %1415 = vmatpush.msra.mxu0 %v1402
      %1416 = vmatpush.msra.mxu0 %v1401
      %1417 = vmatpush.msra.mxu0 %v1400
      %1418 = vmatpush.msra.mxu0 %v1399
      %1419 = vmatpush.msra.mxu0 %v1398
      %1420 = vmatpush.msra.mxu0 %v1397
      %1421 = vmatpush.msra.mxu0 %v1396
      %1422 = vmatpush.msra.mxu0 %v1395
      %1423 = vmatpush.msra.mxu0 %v1394
      %1424 = vmatpush.msra.mxu0 %v1393
      %1425 = vmatpush.msra.mxu0 %v1392
      %1426 = vmatpush.msra.mxu0 %v1391
      %1427 = vmatmul.f32.gmra.mxu0 %v1386
      %v1428 = vpop.f32.mrf.mxu0
      %v1429 = vadd.f32 %v1409, %v1428
      %1430 = vdwg.mxu0
      %v1431 = vxor.u32 %v1429, 2147483648
      %v1432 = vmul.f32 %v1431, 1.442695
      %v1433 = vpow.pop %v1432
      %v1434 = vadd.f32 %v1433, 1.0
      %v1435 = vrcp.pop %v1434
      %v1436 = vmul.f32 %v1434, %v1435
      %v1437 = vsub.f32 1.0, %v1436
      %v1438 = vmul.f32 %v1435, %v1437
      %v1439 = vadd.f32 %v1435, %v1438
      %vm1440 = vweird.f32 %v1434
      %vm1441 = vweird.f32 %v1435
      %vm1442 = vmor %vm1440, %vm1441
      %v1443 = vsel %vm1442, %v1435, %v1439
      %v1444 = vand.u32 2147483647, %v1434
      %vm1445 = vcmp.eq.f32.partialorder %v1444, 8.507059e+37
      %v1446 = vand.u32 %v1434, 2147483648
      %v1447 = vor.u32 1.1754944e-38, %v1446
      %v1448 = vsel %vm1445, %v1447, %v1443
      %v1449 = vmul.f32 1.0, %v1448
      %1450 = vst [vmem:[#allocation13] sm:$0xff] %v1449
    $region57: #{tpu_custom_call.1} parent=1 // pred_fallthru
      _
    // Predicated region
    $region58: #{tpu_custom_call.1} parent=1 // pred_check
      _
    $region59: #{tpu_custom_call.1} parent=1 // pred_check_branch
      %1452 = sbr.rel (0) target = $region61
    $region60: #{tpu_custom_call.1} parent=1 // pred_region
      %1454 = vsyncadd [#allocation6], 0
      %s1456 = sshll.u32 [#allocation13], 4
      %s1457 = int_to_ptr.vmem [resolvable:$true] %s1456
      %s1458 = sshll.u32 %s7, 4
      %s1459 = int_to_ptr.hbm [resolvable:$true] %s1458
      %1461 = dma.vmem_to_hbm [thread:$0]  %s1457, 128, %s1459, [#allocation6]
    $region61: #{tpu_custom_call.1} parent=1 // pred_fallthru
      _
    // Predicated region
    $region62: #{tpu_custom_call.1} parent=1 // pred_check
      _
    $region63: #{tpu_custom_call.1} parent=1 // pred_check_branch
      %1463 = sbr.rel (0) target = $region65
    $region64: #{tpu_custom_call.1} parent=1 // pred_region
      %1465 = dma.done [#allocation6], 128
    $region65: #{tpu_custom_call.1} parent=1 // pred_fallthru
      _
    %1466 = vsyncpa [#allocation5], 1
    %1467 = vsyncpa [#allocation8], 1
    %1468 = vsyncpa [#allocation11], 1
    %1469 = vsyncpa [#allocation6], 1

</llo_original>
